<compile_context>
chip_gen: v7x
topology: tpu7x:2x2x1
jax: 0.10.0
libtpu: 0.0.40
codegen_flags: <defaults>
</compile_context>

<pallas_src>
import jax
import jax.numpy as jnp
from jax import lax
from jax.experimental import pallas as pl
from jax.experimental.pallas import tpu as pltpu


# --------------------------- Fused forward kernel ----------------------------

def _make_gat_forward_kernel(layer_cfgs, e_in, alpha, scratch_width):
    """layer_cfgs: tuple of (num_heads, out_dim, res_mode, is_last) per layer.
    res_mode: 0 = no residual, 1 = identity residual, 2 = projected residual."""
    n_layers = len(layer_cfgs)
    n_params = 3 * n_layers          # (W_ext, wlT, attn_e) per layer
    has_scratch = scratch_width > 0

    def kernel(*refs):
        x_ref, eft_ref, bias_ref = refs[:3]
        prefs = refs[3:3 + n_params]
        out_ref = refs[3 + n_params]
        hsc_ref = refs[3 + n_params + 1] if has_scratch else None
        layer_refs = [prefs[3 * li: 3 * li + 3] for li in range(n_layers)]

        bias = bias_ref[...]                      # (N_dst, N_src) additive mask bias
        h = x_ref[...]                            # (N, F_in) f32

        # ---- Edge-attention projection (hoisted): one sweep over the E_in channel
        # slabs accumulates a3 for EVERY (layer, head) pair. attn_e scalars come
        # from SMEM; each (N, N) slab is loaded exactly once. ----
        total_heads = sum(c[0] for c in layer_cfgs)
        a3_maps = [None] * total_heads
        for e in range(e_in):
            ef_e = eft_ref[e]                     # (N, N) slab
            idx = 0
            for li, (H, D, res_mode, is_last) in enumerate(layer_cfgs):
                ae_ref = layer_refs[li][2]
                for hd in range(H):
                    term = ae_ref[e, hd] * ef_e
                    a3_maps[idx] = term if a3_maps[idx] is None else a3_maps[idx] + term
                    idx += 1

        a3_base = 0
        for li, (H, D, res_mode, is_last) in enumerate(layer_cfgs):
            wext_ref, wlT_ref, _ = layer_refs[li]
            HD = H * D

            # One fused projection matmul: y = h @ [W | W_res? | wr-cols]
            y = jnp.dot(h, wext_ref[...], preferred_element_type=jnp.float32)
            ft = y[:, :HD]                        # (N, H*D)
            off = HD
            res = None
            if res_mode == 2:
                res = y[:, HD:2 * HD]             # projected residual, per-head slices
                off = 2 * HD
            elif res_mode == 1:
                # identity residual (only valid when in_dim == out_dim, as in PyTorch)
                res = h
            a2_all = y[:, off:off + H]            # (N, H): a2[v, head]

            # All per-head a1 rows with one small matmul: (H, F_in) x (N, F_in)^T -> (H, N)
            a1_rows = lax.dot_general(wlT_ref[...], h, (((1,), (1,)), ((), ())),
                                      preferred_element_type=jnp.float32)

            acc = None
            for hd in range(H):
                ft_h = ft[:, hd * D:(hd + 1) * D]             # (N, D)
                a1_row = a1_rows[hd:hd + 1, :]                # (1, N_src)
                a2_col = a2_all[:, hd:hd + 1]                 # (N_dst, 1)

                # scores[v, u] = leaky_relu(a1[u] + a2[v] + a3[v, u]) + mask bias
                s = a2_col + a1_row + a3_maps[a3_base + hd]
                s = jnp.maximum(s, alpha * s) + bias

                # edge softmax over incoming edges of each destination node
                m = jnp.max(s, axis=-1, keepdims=True)
                p = jnp.exp(s - m)                # masked entries underflow to 0
                z = jnp.sum(p, axis=-1, keepdims=True)        # >= 1 (self-loops)
                inv_z = pl.reciprocal(z, approx=True)

                agg = jnp.dot(p, ft_h, preferred_element_type=jnp.float32)  # (N, D)
                o_h = agg * inv_z
                if res_mode == 2:
                    o_h = o_h + res[:, hd * D:(hd + 1) * D]
                elif res_mode == 1:
                    o_h = o_h + res

                if is_last:
                    acc = o_h if acc is None else acc + o_h
                else:
                    # sliced store into the inter-layer scratch slab (no concat relayout)
                    hsc_ref[:, hd * D:(hd + 1) * D] = o_h

            if is_last:
                out_ref[...] = (acc * (1.0 / H)).astype(out_ref.dtype)  # mean over heads
            else:
                hcat = hsc_ref[:, :HD]                                   # flatten(1)
                # ELU activation between layers (alpha = 1)
                h = jnp.where(hcat > 0, hcat,
                              jnp.exp(jnp.minimum(hcat, 0.0)) - 1.0)
            a3_base += H

    return kernel


# --------------------------- Model (functional) ------------------------------

def xavier_normal(key, shape, fan_in, fan_out, gain=1.414):
    std = gain * (2.0 / (fan_in + fan_out)) ** 0.5
    return (std * jax.random.normal(key, shape)).astype(jnp.float32)


def init_graph_attention(key, in_dim, edge_in_dim, out_dim, num_heads, residual):
    k = jax.random.split(key, 5)
    hd = num_heads * out_dim
    params = {
        "W": xavier_normal(k[0], (in_dim, hd), in_dim, hd),                 # fc.weight^T
        "attn_l": xavier_normal(k[1], (num_heads, out_dim), out_dim, num_heads),
        "attn_r": xavier_normal(k[2], (num_heads, out_dim), num_heads, edge_in_dim),
        "attn_e": xavier_normal(k[3], (edge_in_dim, num_heads), num_heads, edge_in_dim),
    }
    res_mode = 0
    if residual:
        if in_dim != out_dim:
            params["W_res"] = xavier_normal(k[4], (in_dim, hd), in_dim, hd)
            res_mode = 2
        else:
            res_mode = 1
    params["_meta"] = (num_heads, out_dim, res_mode)
    return params


def _prepare_layer(p):
    """Host-side parameter folding: W_ext = [W | W_res? | W@attn_r], wlT = (W@attn_l)^T."""
    H, D, res_mode = p["_meta"]
    W = p["W"]                                   # (in_dim, H*D)
    in_dim = W.shape[0]
    Wh = W.reshape(in_dim, H, D)
    wr = jnp.einsum("fhd,hd->fh", Wh, p["attn_r"])    # (in_dim, H): a2 columns
    wlT = jnp.einsum("fhd,hd->hf", Wh, p["attn_l"])   # (H, in_dim): a1 rows
    blocks = [W]
    if res_mode == 2:
        blocks.append(p["W_res"])
    blocks.append(wr)
    W_ext = jnp.concatenate(blocks, axis=1).astype(jnp.float32)
    return W_ext, wlT.astype(jnp.float32), p["attn_e"].astype(jnp.float32)


def gat_edgeat_forward(params_list, x, ef_dense, mask, alpha):
    """Whole GAT_EdgeAT forward pass as a single fused pallas_call."""
    # TODO(synk): feat_drop / attn_drop (nn.Dropout) are identity here (eval mode).
    N = x.shape[0]
    e_in = ef_dense.shape[-1]
    # One-time layout prep shared by every layer:
    # (N_dst, N_src, E_in) -> (E_in, N_dst, N_src) lane-dense channel slabs.
    ef_t = jnp.transpose(ef_dense, (2, 0, 1))
    # Additive mask bias computed once (0 on edges, -1e30 on non-edges).
    bias = jnp.where(mask > 0, 0.0, -1e30).astype(jnp.float32)

    layer_cfgs = []
    flat_params = []
    in_specs = [
        pl.BlockSpec(memory_space=pltpu.MemorySpace.VMEM),   # x
        pl.BlockSpec(memory_space=pltpu.MemorySpace.VMEM),   # ef_t
        pl.BlockSpec(memory_space=pltpu.MemorySpace.VMEM),   # bias
    ]
    n = len(params_list)
    for i, p in enumerate(params_list):
        H, D, res_mode = p["_meta"]
        is_last = (i == n - 1)
        layer_cfgs.append((H, D, res_mode, is_last))
        W_ext, wlT, attn_e = _prepare_layer(p)
        flat_params.extend([W_ext, wlT, attn_e])
        in_specs.extend([
            pl.BlockSpec(memory_space=pltpu.MemorySpace.VMEM),   # W_ext
            pl.BlockSpec(memory_space=pltpu.MemorySpace.VMEM),   # wlT
            pl.BlockSpec(memory_space=pltpu.MemorySpace.SMEM),   # attn_e (scalar reads)
        ])

    inner_widths = [H * D for (H, D, _, last) in layer_cfgs if not last]
    scratch_width = max(inner_widths) if inner_widths else 0
    scratch_shapes = []
    if scratch_width:
        scratch_shapes.append(pltpu.VMEM((N, scratch_width), jnp.float32))

    num_classes = params_list[-1]["_meta"][1]
    kernel = _make_gat_forward_kernel(tuple(layer_cfgs), e_in, float(alpha),
                                      scratch_width)

    return pl.pallas_call(
        kernel,
        out_shape=jax.ShapeDtypeStruct((N, num_classes), jnp.float32),
        in_specs=in_specs,
        out_specs=pl.BlockSpec(memory_space=pltpu.MemorySpace.VMEM),
        scratch_shapes=scratch_shapes,
    )(x, ef_t, bias, *flat_params)


# --------------------------------- main --------------------------------------

if __name__ == "__main__":
    key = jax.random.PRNGKey(0)

    # small, module-consistent config
    N = 32                 # nodes
    in_dim = 16
    edge_in_dim = 8
    num_hidden = 16
    num_classes = 4
    heads = [2, 2, 2]      # len = num_layers + 1
    num_layers = 2
    alpha = 0.2            # LeakyReLU negative slope
    residual = True

    kx, ke, ka, kp = jax.random.split(key, 4)

    x = jax.random.normal(kx, (N, in_dim), dtype=jnp.float32)

    # adjacency mask (mask[v, u] = edge u -> v) with guaranteed self-loops
    mask = (jax.random.uniform(ka, (N, N)) < 0.3).astype(jnp.float32)
    mask = jnp.maximum(mask, jnp.eye(N, dtype=jnp.float32))

    # dense edge features, zero where no edge
    ef_dense = jax.random.normal(ke, (N, N, edge_in_dim), dtype=jnp.float32) * mask[..., None]

    # per-layer parameters (mirrors GAT_EdgeAT.__init__)
    pkeys = jax.random.split(kp, num_layers + 1)
    params = [init_graph_attention(pkeys[0], in_dim, edge_in_dim, num_hidden, heads[0], False)]
    for l in range(1, num_layers):
        params.append(init_graph_attention(pkeys[l], num_hidden * heads[l - 1],
                                            edge_in_dim, num_hidden, heads[l], residual))
    params.append(init_graph_attention(pkeys[num_layers], num_hidden * heads[-2],
                                        edge_in_dim, num_classes, heads[-1], residual))

    logits = gat_edgeat_forward(params, x, ef_dense, mask, alpha)
    logits = jax.block_until_ready(logits)

    assert logits.shape == (N, num_classes), logits.shape
    assert bool(jnp.all(jnp.isfinite(logits)))
    print("KERNEL_OK")
</pallas_src>

<mosaic_0001>
module attributes {stable_mosaic.version = 11 : i64} {
  func.func @kernel(%arg0: memref<32x16xf32, #tpu.memory_space<vmem>>, %arg1: memref<8x32x32xf32, #tpu.memory_space<vmem>>, %arg2: memref<32x32xf32, #tpu.memory_space<vmem>>, %arg3: memref<16x34xf32, #tpu.memory_space<vmem>>, %arg4: memref<2x16xf32, #tpu.memory_space<vmem>>, %arg5: memref<8x2xf32, #tpu.memory_space<smem>>, %arg6: memref<32x66xf32, #tpu.memory_space<vmem>>, %arg7: memref<2x32xf32, #tpu.memory_space<vmem>>, %arg8: memref<8x2xf32, #tpu.memory_space<smem>>, %arg9: memref<32x18xf32, #tpu.memory_space<vmem>>, %arg10: memref<2x32xf32, #tpu.memory_space<vmem>>, %arg11: memref<8x2xf32, #tpu.memory_space<smem>>, %arg12: memref<32x4xf32, #tpu.memory_space<vmem>>, %arg13: memref<32x32xf32, #tpu.memory_space<vmem>>) attributes {dimension_semantics = [], scalar_prefetch = 0 : i64, scratch_operands = 1 : i64, tpu.core_type = #tpu.core_type<tc>} {
    %c0 = arith.constant 0 : index
    %c0_0 = arith.constant 0 : index
    %0 = vector.load %arg2[%c0, %c0_0] : memref<32x32xf32, #tpu.memory_space<vmem>>, vector<32x32xf32>
    %c0_1 = arith.constant 0 : index
    %c0_2 = arith.constant 0 : index
    %1 = vector.load %arg0[%c0_1, %c0_2] : memref<32x16xf32, #tpu.memory_space<vmem>>, vector<32x16xf32>
    %c0_3 = arith.constant 0 : index
    %c0_4 = arith.constant 0 : index
    %c0_5 = arith.constant 0 : index
    %2 = vector.load %arg1[%c0_3, %c0_4, %c0_5] : memref<8x32x32xf32, #tpu.memory_space<vmem>>, vector<1x32x32xf32>
    %3 = vector.shape_cast %2 : vector<1x32x32xf32> to vector<32x32xf32>
    %c0_6 = arith.constant 0 : index
    %c0_7 = arith.constant 0 : index
    %4 = memref.load %arg5[%c0_6, %c0_7] : memref<8x2xf32, #tpu.memory_space<smem>>
    %5 = vector.broadcast %4 : f32 to vector<32x32xf32>
    %6 = arith.mulf %5, %3 : vector<32x32xf32>
    %c0_8 = arith.constant 0 : index
    %c1 = arith.constant 1 : index
    %7 = memref.load %arg5[%c0_8, %c1] : memref<8x2xf32, #tpu.memory_space<smem>>
    %8 = vector.broadcast %7 : f32 to vector<32x32xf32>
    %9 = arith.mulf %8, %3 : vector<32x32xf32>
    %c0_9 = arith.constant 0 : index
    %c0_10 = arith.constant 0 : index
    %10 = memref.load %arg8[%c0_9, %c0_10] : memref<8x2xf32, #tpu.memory_space<smem>>
    %11 = vector.broadcast %10 : f32 to vector<32x32xf32>
    %12 = arith.mulf %11, %3 : vector<32x32xf32>
    %c0_11 = arith.constant 0 : index
    %c1_12 = arith.constant 1 : index
    %13 = memref.load %arg8[%c0_11, %c1_12] : memref<8x2xf32, #tpu.memory_space<smem>>
    %14 = vector.broadcast %13 : f32 to vector<32x32xf32>
    %15 = arith.mulf %14, %3 : vector<32x32xf32>
    %c0_13 = arith.constant 0 : index
    %c0_14 = arith.constant 0 : index
    %16 = memref.load %arg11[%c0_13, %c0_14] : memref<8x2xf32, #tpu.memory_space<smem>>
    %17 = vector.broadcast %16 : f32 to vector<32x32xf32>
    %18 = arith.mulf %17, %3 : vector<32x32xf32>
    %c0_15 = arith.constant 0 : index
    %c1_16 = arith.constant 1 : index
    %19 = memref.load %arg11[%c0_15, %c1_16] : memref<8x2xf32, #tpu.memory_space<smem>>
    %20 = vector.broadcast %19 : f32 to vector<32x32xf32>
    %21 = arith.mulf %20, %3 : vector<32x32xf32>
    %c1_17 = arith.constant 1 : index
    %c0_18 = arith.constant 0 : index
    %c0_19 = arith.constant 0 : index
    %22 = vector.load %arg1[%c1_17, %c0_18, %c0_19] : memref<8x32x32xf32, #tpu.memory_space<vmem>>, vector<1x32x32xf32>
    %23 = vector.shape_cast %22 : vector<1x32x32xf32> to vector<32x32xf32>
    %c1_20 = arith.constant 1 : index
    %c0_21 = arith.constant 0 : index
    %24 = memref.load %arg5[%c1_20, %c0_21] : memref<8x2xf32, #tpu.memory_space<smem>>
    %25 = vector.broadcast %24 : f32 to vector<32x32xf32>
    %26 = arith.mulf %25, %23 : vector<32x32xf32>
    %27 = arith.addf %6, %26 : vector<32x32xf32>
    %c1_22 = arith.constant 1 : index
    %c1_23 = arith.constant 1 : index
    %28 = memref.load %arg5[%c1_22, %c1_23] : memref<8x2xf32, #tpu.memory_space<smem>>
    %29 = vector.broadcast %28 : f32 to vector<32x32xf32>
    %30 = arith.mulf %29, %23 : vector<32x32xf32>
    %31 = arith.addf %9, %30 : vector<32x32xf32>
    %c1_24 = arith.constant 1 : index
    %c0_25 = arith.constant 0 : index
    %32 = memref.load %arg8[%c1_24, %c0_25] : memref<8x2xf32, #tpu.memory_space<smem>>
    %33 = vector.broadcast %32 : f32 to vector<32x32xf32>
    %34 = arith.mulf %33, %23 : vector<32x32xf32>
    %35 = arith.addf %12, %34 : vector<32x32xf32>
    %c1_26 = arith.constant 1 : index
    %c1_27 = arith.constant 1 : index
    %36 = memref.load %arg8[%c1_26, %c1_27] : memref<8x2xf32, #tpu.memory_space<smem>>
    %37 = vector.broadcast %36 : f32 to vector<32x32xf32>
    %38 = arith.mulf %37, %23 : vector<32x32xf32>
    %39 = arith.addf %15, %38 : vector<32x32xf32>
    %c1_28 = arith.constant 1 : index
    %c0_29 = arith.constant 0 : index
    %40 = memref.load %arg11[%c1_28, %c0_29] : memref<8x2xf32, #tpu.memory_space<smem>>
    %41 = vector.broadcast %40 : f32 to vector<32x32xf32>
    %42 = arith.mulf %41, %23 : vector<32x32xf32>
    %43 = arith.addf %18, %42 : vector<32x32xf32>
    %c1_30 = arith.constant 1 : index
    %c1_31 = arith.constant 1 : index
    %44 = memref.load %arg11[%c1_30, %c1_31] : memref<8x2xf32, #tpu.memory_space<smem>>
    %45 = vector.broadcast %44 : f32 to vector<32x32xf32>
    %46 = arith.mulf %45, %23 : vector<32x32xf32>
    %47 = arith.addf %21, %46 : vector<32x32xf32>
    %c2 = arith.constant 2 : index
    %c0_32 = arith.constant 0 : index
    %c0_33 = arith.constant 0 : index
    %48 = vector.load %arg1[%c2, %c0_32, %c0_33] : memref<8x32x32xf32, #tpu.memory_space<vmem>>, vector<1x32x32xf32>
    %49 = vector.shape_cast %48 : vector<1x32x32xf32> to vector<32x32xf32>
    %c2_34 = arith.constant 2 : index
    %c0_35 = arith.constant 0 : index
    %50 = memref.load %arg5[%c2_34, %c0_35] : memref<8x2xf32, #tpu.memory_space<smem>>
    %51 = vector.broadcast %50 : f32 to vector<32x32xf32>
    %52 = arith.mulf %51, %49 : vector<32x32xf32>
    %53 = arith.addf %27, %52 : vector<32x32xf32>
    %c2_36 = arith.constant 2 : index
    %c1_37 = arith.constant 1 : index
    %54 = memref.load %arg5[%c2_36, %c1_37] : memref<8x2xf32, #tpu.memory_space<smem>>
    %55 = vector.broadcast %54 : f32 to vector<32x32xf32>
    %56 = arith.mulf %55, %49 : vector<32x32xf32>
    %57 = arith.addf %31, %56 : vector<32x32xf32>
    %c2_38 = arith.constant 2 : index
    %c0_39 = arith.constant 0 : index
    %58 = memref.load %arg8[%c2_38, %c0_39] : memref<8x2xf32, #tpu.memory_space<smem>>
    %59 = vector.broadcast %58 : f32 to vector<32x32xf32>
    %60 = arith.mulf %59, %49 : vector<32x32xf32>
    %61 = arith.addf %35, %60 : vector<32x32xf32>
    %c2_40 = arith.constant 2 : index
    %c1_41 = arith.constant 1 : index
    %62 = memref.load %arg8[%c2_40, %c1_41] : memref<8x2xf32, #tpu.memory_space<smem>>
    %63 = vector.broadcast %62 : f32 to vector<32x32xf32>
    %64 = arith.mulf %63, %49 : vector<32x32xf32>
    %65 = arith.addf %39, %64 : vector<32x32xf32>
    %c2_42 = arith.constant 2 : index
    %c0_43 = arith.constant 0 : index
    %66 = memref.load %arg11[%c2_42, %c0_43] : memref<8x2xf32, #tpu.memory_space<smem>>
    %67 = vector.broadcast %66 : f32 to vector<32x32xf32>
    %68 = arith.mulf %67, %49 : vector<32x32xf32>
    %69 = arith.addf %43, %68 : vector<32x32xf32>
    %c2_44 = arith.constant 2 : index
    %c1_45 = arith.constant 1 : index
    %70 = memref.load %arg11[%c2_44, %c1_45] : memref<8x2xf32, #tpu.memory_space<smem>>
    %71 = vector.broadcast %70 : f32 to vector<32x32xf32>
    %72 = arith.mulf %71, %49 : vector<32x32xf32>
    %73 = arith.addf %47, %72 : vector<32x32xf32>
    %c3 = arith.constant 3 : index
    %c0_46 = arith.constant 0 : index
    %c0_47 = arith.constant 0 : index
    %74 = vector.load %arg1[%c3, %c0_46, %c0_47] : memref<8x32x32xf32, #tpu.memory_space<vmem>>, vector<1x32x32xf32>
    %75 = vector.shape_cast %74 : vector<1x32x32xf32> to vector<32x32xf32>
    %c3_48 = arith.constant 3 : index
    %c0_49 = arith.constant 0 : index
    %76 = memref.load %arg5[%c3_48, %c0_49] : memref<8x2xf32, #tpu.memory_space<smem>>
    %77 = vector.broadcast %76 : f32 to vector<32x32xf32>
    %78 = arith.mulf %77, %75 : vector<32x32xf32>
    %79 = arith.addf %53, %78 : vector<32x32xf32>
    %c3_50 = arith.constant 3 : index
    %c1_51 = arith.constant 1 : index
    %80 = memref.load %arg5[%c3_50, %c1_51] : memref<8x2xf32, #tpu.memory_space<smem>>
    %81 = vector.broadcast %80 : f32 to vector<32x32xf32>
    %82 = arith.mulf %81, %75 : vector<32x32xf32>
    %83 = arith.addf %57, %82 : vector<32x32xf32>
    %c3_52 = arith.constant 3 : index
    %c0_53 = arith.constant 0 : index
    %84 = memref.load %arg8[%c3_52, %c0_53] : memref<8x2xf32, #tpu.memory_space<smem>>
    %85 = vector.broadcast %84 : f32 to vector<32x32xf32>
    %86 = arith.mulf %85, %75 : vector<32x32xf32>
    %87 = arith.addf %61, %86 : vector<32x32xf32>
    %c3_54 = arith.constant 3 : index
    %c1_55 = arith.constant 1 : index
    %88 = memref.load %arg8[%c3_54, %c1_55] : memref<8x2xf32, #tpu.memory_space<smem>>
    %89 = vector.broadcast %88 : f32 to vector<32x32xf32>
    %90 = arith.mulf %89, %75 : vector<32x32xf32>
    %91 = arith.addf %65, %90 : vector<32x32xf32>
    %c3_56 = arith.constant 3 : index
    %c0_57 = arith.constant 0 : index
    %92 = memref.load %arg11[%c3_56, %c0_57] : memref<8x2xf32, #tpu.memory_space<smem>>
    %93 = vector.broadcast %92 : f32 to vector<32x32xf32>
    %94 = arith.mulf %93, %75 : vector<32x32xf32>
    %95 = arith.addf %69, %94 : vector<32x32xf32>
    %c3_58 = arith.constant 3 : index
    %c1_59 = arith.constant 1 : index
    %96 = memref.load %arg11[%c3_58, %c1_59] : memref<8x2xf32, #tpu.memory_space<smem>>
    %97 = vector.broadcast %96 : f32 to vector<32x32xf32>
    %98 = arith.mulf %97, %75 : vector<32x32xf32>
    %99 = arith.addf %73, %98 : vector<32x32xf32>
    %c4 = arith.constant 4 : index
    %c0_60 = arith.constant 0 : index
    %c0_61 = arith.constant 0 : index
    %100 = vector.load %arg1[%c4, %c0_60, %c0_61] : memref<8x32x32xf32, #tpu.memory_space<vmem>>, vector<1x32x32xf32>
    %101 = vector.shape_cast %100 : vector<1x32x32xf32> to vector<32x32xf32>
    %c4_62 = arith.constant 4 : index
    %c0_63 = arith.constant 0 : index
    %102 = memref.load %arg5[%c4_62, %c0_63] : memref<8x2xf32, #tpu.memory_space<smem>>
    %103 = vector.broadcast %102 : f32 to vector<32x32xf32>
    %104 = arith.mulf %103, %101 : vector<32x32xf32>
    %105 = arith.addf %79, %104 : vector<32x32xf32>
    %c4_64 = arith.constant 4 : index
    %c1_65 = arith.constant 1 : index
    %106 = memref.load %arg5[%c4_64, %c1_65] : memref<8x2xf32, #tpu.memory_space<smem>>
    %107 = vector.broadcast %106 : f32 to vector<32x32xf32>
    %108 = arith.mulf %107, %101 : vector<32x32xf32>
    %109 = arith.addf %83, %108 : vector<32x32xf32>
    %c4_66 = arith.constant 4 : index
    %c0_67 = arith.constant 0 : index
    %110 = memref.load %arg8[%c4_66, %c0_67] : memref<8x2xf32, #tpu.memory_space<smem>>
    %111 = vector.broadcast %110 : f32 to vector<32x32xf32>
    %112 = arith.mulf %111, %101 : vector<32x32xf32>
    %113 = arith.addf %87, %112 : vector<32x32xf32>
    %c4_68 = arith.constant 4 : index
    %c1_69 = arith.constant 1 : index
    %114 = memref.load %arg8[%c4_68, %c1_69] : memref<8x2xf32, #tpu.memory_space<smem>>
    %115 = vector.broadcast %114 : f32 to vector<32x32xf32>
    %116 = arith.mulf %115, %101 : vector<32x32xf32>
    %117 = arith.addf %91, %116 : vector<32x32xf32>
    %c4_70 = arith.constant 4 : index
    %c0_71 = arith.constant 0 : index
    %118 = memref.load %arg11[%c4_70, %c0_71] : memref<8x2xf32, #tpu.memory_space<smem>>
    %119 = vector.broadcast %118 : f32 to vector<32x32xf32>
    %120 = arith.mulf %119, %101 : vector<32x32xf32>
    %121 = arith.addf %95, %120 : vector<32x32xf32>
    %c4_72 = arith.constant 4 : index
    %c1_73 = arith.constant 1 : index
    %122 = memref.load %arg11[%c4_72, %c1_73] : memref<8x2xf32, #tpu.memory_space<smem>>
    %123 = vector.broadcast %122 : f32 to vector<32x32xf32>
    %124 = arith.mulf %123, %101 : vector<32x32xf32>
    %125 = arith.addf %99, %124 : vector<32x32xf32>
    %c5 = arith.constant 5 : index
    %c0_74 = arith.constant 0 : index
    %c0_75 = arith.constant 0 : index
    %126 = vector.load %arg1[%c5, %c0_74, %c0_75] : memref<8x32x32xf32, #tpu.memory_space<vmem>>, vector<1x32x32xf32>
    %127 = vector.shape_cast %126 : vector<1x32x32xf32> to vector<32x32xf32>
    %c5_76 = arith.constant 5 : index
    %c0_77 = arith.constant 0 : index
    %128 = memref.load %arg5[%c5_76, %c0_77] : memref<8x2xf32, #tpu.memory_space<smem>>
    %129 = vector.broadcast %128 : f32 to vector<32x32xf32>
    %130 = arith.mulf %129, %127 : vector<32x32xf32>
    %131 = arith.addf %105, %130 : vector<32x32xf32>
    %c5_78 = arith.constant 5 : index
    %c1_79 = arith.constant 1 : index
    %132 = memref.load %arg5[%c5_78, %c1_79] : memref<8x2xf32, #tpu.memory_space<smem>>
    %133 = vector.broadcast %132 : f32 to vector<32x32xf32>
    %134 = arith.mulf %133, %127 : vector<32x32xf32>
    %135 = arith.addf %109, %134 : vector<32x32xf32>
    %c5_80 = arith.constant 5 : index
    %c0_81 = arith.constant 0 : index
    %136 = memref.load %arg8[%c5_80, %c0_81] : memref<8x2xf32, #tpu.memory_space<smem>>
    %137 = vector.broadcast %136 : f32 to vector<32x32xf32>
    %138 = arith.mulf %137, %127 : vector<32x32xf32>
    %139 = arith.addf %113, %138 : vector<32x32xf32>
    %c5_82 = arith.constant 5 : index
    %c1_83 = arith.constant 1 : index
    %140 = memref.load %arg8[%c5_82, %c1_83] : memref<8x2xf32, #tpu.memory_space<smem>>
    %141 = vector.broadcast %140 : f32 to vector<32x32xf32>
    %142 = arith.mulf %141, %127 : vector<32x32xf32>
    %143 = arith.addf %117, %142 : vector<32x32xf32>
    %c5_84 = arith.constant 5 : index
    %c0_85 = arith.constant 0 : index
    %144 = memref.load %arg11[%c5_84, %c0_85] : memref<8x2xf32, #tpu.memory_space<smem>>
    %145 = vector.broadcast %144 : f32 to vector<32x32xf32>
    %146 = arith.mulf %145, %127 : vector<32x32xf32>
    %147 = arith.addf %121, %146 : vector<32x32xf32>
    %c5_86 = arith.constant 5 : index
    %c1_87 = arith.constant 1 : index
    %148 = memref.load %arg11[%c5_86, %c1_87] : memref<8x2xf32, #tpu.memory_space<smem>>
    %149 = vector.broadcast %148 : f32 to vector<32x32xf32>
    %150 = arith.mulf %149, %127 : vector<32x32xf32>
    %151 = arith.addf %125, %150 : vector<32x32xf32>
    %c6 = arith.constant 6 : index
    %c0_88 = arith.constant 0 : index
    %c0_89 = arith.constant 0 : index
    %152 = vector.load %arg1[%c6, %c0_88, %c0_89] : memref<8x32x32xf32, #tpu.memory_space<vmem>>, vector<1x32x32xf32>
    %153 = vector.shape_cast %152 : vector<1x32x32xf32> to vector<32x32xf32>
    %c6_90 = arith.constant 6 : index
    %c0_91 = arith.constant 0 : index
    %154 = memref.load %arg5[%c6_90, %c0_91] : memref<8x2xf32, #tpu.memory_space<smem>>
    %155 = vector.broadcast %154 : f32 to vector<32x32xf32>
    %156 = arith.mulf %155, %153 : vector<32x32xf32>
    %157 = arith.addf %131, %156 : vector<32x32xf32>
    %c6_92 = arith.constant 6 : index
    %c1_93 = arith.constant 1 : index
    %158 = memref.load %arg5[%c6_92, %c1_93] : memref<8x2xf32, #tpu.memory_space<smem>>
    %159 = vector.broadcast %158 : f32 to vector<32x32xf32>
    %160 = arith.mulf %159, %153 : vector<32x32xf32>
    %161 = arith.addf %135, %160 : vector<32x32xf32>
    %c6_94 = arith.constant 6 : index
    %c0_95 = arith.constant 0 : index
    %162 = memref.load %arg8[%c6_94, %c0_95] : memref<8x2xf32, #tpu.memory_space<smem>>
    %163 = vector.broadcast %162 : f32 to vector<32x32xf32>
    %164 = arith.mulf %163, %153 : vector<32x32xf32>
    %165 = arith.addf %139, %164 : vector<32x32xf32>
    %c6_96 = arith.constant 6 : index
    %c1_97 = arith.constant 1 : index
    %166 = memref.load %arg8[%c6_96, %c1_97] : memref<8x2xf32, #tpu.memory_space<smem>>
    %167 = vector.broadcast %166 : f32 to vector<32x32xf32>
    %168 = arith.mulf %167, %153 : vector<32x32xf32>
    %169 = arith.addf %143, %168 : vector<32x32xf32>
    %c6_98 = arith.constant 6 : index
    %c0_99 = arith.constant 0 : index
    %170 = memref.load %arg11[%c6_98, %c0_99] : memref<8x2xf32, #tpu.memory_space<smem>>
    %171 = vector.broadcast %170 : f32 to vector<32x32xf32>
    %172 = arith.mulf %171, %153 : vector<32x32xf32>
    %173 = arith.addf %147, %172 : vector<32x32xf32>
    %c6_100 = arith.constant 6 : index
    %c1_101 = arith.constant 1 : index
    %174 = memref.load %arg11[%c6_100, %c1_101] : memref<8x2xf32, #tpu.memory_space<smem>>
    %175 = vector.broadcast %174 : f32 to vector<32x32xf32>
    %176 = arith.mulf %175, %153 : vector<32x32xf32>
    %177 = arith.addf %151, %176 : vector<32x32xf32>
    %c7 = arith.constant 7 : index
    %c0_102 = arith.constant 0 : index
    %c0_103 = arith.constant 0 : index
    %178 = vector.load %arg1[%c7, %c0_102, %c0_103] : memref<8x32x32xf32, #tpu.memory_space<vmem>>, vector<1x32x32xf32>
    %179 = vector.shape_cast %178 : vector<1x32x32xf32> to vector<32x32xf32>
    %c7_104 = arith.constant 7 : index
    %c0_105 = arith.constant 0 : index
    %180 = memref.load %arg5[%c7_104, %c0_105] : memref<8x2xf32, #tpu.memory_space<smem>>
    %181 = vector.broadcast %180 : f32 to vector<32x32xf32>
    %182 = arith.mulf %181, %179 : vector<32x32xf32>
    %183 = arith.addf %157, %182 : vector<32x32xf32>
    %c7_106 = arith.constant 7 : index
    %c1_107 = arith.constant 1 : index
    %184 = memref.load %arg5[%c7_106, %c1_107] : memref<8x2xf32, #tpu.memory_space<smem>>
    %185 = vector.broadcast %184 : f32 to vector<32x32xf32>
    %186 = arith.mulf %185, %179 : vector<32x32xf32>
    %187 = arith.addf %161, %186 : vector<32x32xf32>
    %c7_108 = arith.constant 7 : index
    %c0_109 = arith.constant 0 : index
    %188 = memref.load %arg8[%c7_108, %c0_109] : memref<8x2xf32, #tpu.memory_space<smem>>
    %189 = vector.broadcast %188 : f32 to vector<32x32xf32>
    %190 = arith.mulf %189, %179 : vector<32x32xf32>
    %191 = arith.addf %165, %190 : vector<32x32xf32>
    %c7_110 = arith.constant 7 : index
    %c1_111 = arith.constant 1 : index
    %192 = memref.load %arg8[%c7_110, %c1_111] : memref<8x2xf32, #tpu.memory_space<smem>>
    %193 = vector.broadcast %192 : f32 to vector<32x32xf32>
    %194 = arith.mulf %193, %179 : vector<32x32xf32>
    %195 = arith.addf %169, %194 : vector<32x32xf32>
    %c7_112 = arith.constant 7 : index
    %c0_113 = arith.constant 0 : index
    %196 = memref.load %arg11[%c7_112, %c0_113] : memref<8x2xf32, #tpu.memory_space<smem>>
    %197 = vector.broadcast %196 : f32 to vector<32x32xf32>
    %198 = arith.mulf %197, %179 : vector<32x32xf32>
    %199 = arith.addf %173, %198 : vector<32x32xf32>
    %c7_114 = arith.constant 7 : index
    %c1_115 = arith.constant 1 : index
    %200 = memref.load %arg11[%c7_114, %c1_115] : memref<8x2xf32, #tpu.memory_space<smem>>
    %201 = vector.broadcast %200 : f32 to vector<32x32xf32>
    %202 = arith.mulf %201, %179 : vector<32x32xf32>
    %203 = arith.addf %177, %202 : vector<32x32xf32>
    %c0_116 = arith.constant 0 : index
    %c0_117 = arith.constant 0 : index
    %204 = vector.load %arg3[%c0_116, %c0_117] : memref<16x34xf32, #tpu.memory_space<vmem>>, vector<16x34xf32>
    %cst = arith.constant dense<0.000000e+00> : vector<32x34xf32>
    %205 = tpu.matmul %1, %204, %cst {dimension_numbers = #tpu.dot_dimension_numbers<[1], [0], [0], [1], [0, 0, 1, 1], [], []>} : vector<32x16xf32>, vector<16x34xf32>, vector<32x34xf32> -> vector<32x34xf32>
    %206 = vector.extract_strided_slice %205 {offsets = [0, 0], sizes = [32, 32], strides = [1, 1]} : vector<32x34xf32> to vector<32x32xf32>
    %207 = vector.extract_strided_slice %205 {offsets = [0, 32], sizes = [32, 2], strides = [1, 1]} : vector<32x34xf32> to vector<32x2xf32>
    %c0_118 = arith.constant 0 : index
    %c0_119 = arith.constant 0 : index
    %208 = vector.load %arg4[%c0_118, %c0_119] : memref<2x16xf32, #tpu.memory_space<vmem>>, vector<2x16xf32>
    %cst_120 = arith.constant dense<0.000000e+00> : vector<2x32xf32>
    %209 = tpu.matmul %208, %1, %cst_120 {dimension_numbers = #tpu.dot_dimension_numbers<[1], [1], [0], [0], [0, 0, 1, 0], [], []>} : vector<2x16xf32>, vector<32x16xf32>, vector<2x32xf32> -> vector<2x32xf32>
    %210 = vector.extract_strided_slice %206 {offsets = [0, 0], sizes = [32, 16], strides = [1, 1]} : vector<32x32xf32> to vector<32x16xf32>
    %211 = vector.extract_strided_slice %209 {offsets = [0, 0], sizes = [1, 32], strides = [1, 1]} : vector<2x32xf32> to vector<1x32xf32>
    %212 = vector.extract_strided_slice %207 {offsets = [0, 0], sizes = [32, 1], strides = [1, 1]} : vector<32x2xf32> to vector<32x1xf32>
    %213 = vector.broadcast %212 : vector<32x1xf32> to vector<32x32xf32>
    %214 = vector.broadcast %211 : vector<1x32xf32> to vector<32x32xf32>
    %215 = arith.addf %213, %214 : vector<32x32xf32>
    %216 = arith.addf %215, %183 : vector<32x32xf32>
    %cst_121 = arith.constant 2.000000e-01 : f32
    %217 = vector.broadcast %cst_121 : f32 to vector<32x32xf32>
    %218 = arith.mulf %217, %216 : vector<32x32xf32>
    %219 = arith.maximumf %216, %218 : vector<32x32xf32>
    %220 = arith.addf %219, %0 : vector<32x32xf32>
    %cst_122 = arith.constant dense<0xFF800000> : vector<32xf32>
    %221 = vector.multi_reduction <maximumf>, %220, %cst_122 [1] : vector<32x32xf32> to vector<32xf32>
    %222 = vector.shape_cast %221 : vector<32xf32> to vector<32x1xf32>
    %223 = vector.broadcast %222 : vector<32x1xf32> to vector<32x32xf32>
    %224 = arith.subf %220, %223 : vector<32x32xf32>
    %225 = math.exp %224 : vector<32x32xf32>
    %cst_123 = arith.constant dense<0.000000e+00> : vector<32xf32>
    %226 = vector.multi_reduction <add>, %225, %cst_123 [1] : vector<32x32xf32> to vector<32xf32>
    %227 = vector.shape_cast %226 : vector<32xf32> to vector<32x1xf32>
    %228 = tpu.reciprocal %227 {approx = true} : vector<32x1xf32> -> vector<32x1xf32>
    %cst_124 = arith.constant dense<0.000000e+00> : vector<32x16xf32>
    %229 = tpu.matmul %225, %210, %cst_124 {dimension_numbers = #tpu.dot_dimension_numbers<[1], [0], [0], [1], [0, 0, 1, 1], [], []>} : vector<32x32xf32>, vector<32x16xf32>, vector<32x16xf32> -> vector<32x16xf32>
    %230 = vector.broadcast %228 : vector<32x1xf32> to vector<32x16xf32>
    %231 = arith.mulf %229, %230 : vector<32x16xf32>
    %c0_125 = arith.constant 0 : index
    %c0_126 = arith.constant 0 : index
    %232 = vector.load %arg13[%c0_125, %c0_126] : memref<32x32xf32, #tpu.memory_space<vmem>>, vector<32x16xf32>
    tpu.vector_store %arg13[%c0_125, %c0_126], %231 {strides = array<i32>} : memref<32x32xf32, #tpu.memory_space<vmem>>, vector<32x16xf32>,
    %233 = vector.extract_strided_slice %206 {offsets = [0, 16], sizes = [32, 16], strides = [1, 1]} : vector<32x32xf32> to vector<32x16xf32>
    %234 = vector.extract_strided_slice %209 {offsets = [1, 0], sizes = [1, 32], strides = [1, 1]} : vector<2x32xf32> to vector<1x32xf32>
    %235 = vector.extract_strided_slice %207 {offsets = [0, 1], sizes = [32, 1], strides = [1, 1]} : vector<32x2xf32> to vector<32x1xf32>
    %236 = vector.broadcast %235 : vector<32x1xf32> to vector<32x32xf32>
    %237 = vector.broadcast %234 : vector<1x32xf32> to vector<32x32xf32>
    %238 = arith.addf %236, %237 : vector<32x32xf32>
    %239 = arith.addf %238, %187 : vector<32x32xf32>
    %cst_127 = arith.constant 2.000000e-01 : f32
    %240 = vector.broadcast %cst_127 : f32 to vector<32x32xf32>
    %241 = arith.mulf %240, %239 : vector<32x32xf32>
    %242 = arith.maximumf %239, %241 : vector<32x32xf32>
    %243 = arith.addf %242, %0 : vector<32x32xf32>
    %cst_128 = arith.constant dense<0xFF800000> : vector<32xf32>
    %244 = vector.multi_reduction <maximumf>, %243, %cst_128 [1] : vector<32x32xf32> to vector<32xf32>
    %245 = vector.shape_cast %244 : vector<32xf32> to vector<32x1xf32>
    %246 = vector.broadcast %245 : vector<32x1xf32> to vector<32x32xf32>
    %247 = arith.subf %243, %246 : vector<32x32xf32>
    %248 = math.exp %247 : vector<32x32xf32>
    %cst_129 = arith.constant dense<0.000000e+00> : vector<32xf32>
    %249 = vector.multi_reduction <add>, %248, %cst_129 [1] : vector<32x32xf32> to vector<32xf32>
    %250 = vector.shape_cast %249 : vector<32xf32> to vector<32x1xf32>
    %251 = tpu.reciprocal %250 {approx = true} : vector<32x1xf32> -> vector<32x1xf32>
    %cst_130 = arith.constant dense<0.000000e+00> : vector<32x16xf32>
    %252 = tpu.matmul %248, %233, %cst_130 {dimension_numbers = #tpu.dot_dimension_numbers<[1], [0], [0], [1], [0, 0, 1, 1], [], []>} : vector<32x32xf32>, vector<32x16xf32>, vector<32x16xf32> -> vector<32x16xf32>
    %253 = vector.broadcast %251 : vector<32x1xf32> to vector<32x16xf32>
    %254 = arith.mulf %252, %253 : vector<32x16xf32>
    %c0_131 = arith.constant 0 : index
    %c16 = arith.constant 16 : index
    %255 = vector.load %arg13[%c0_131, %c16] : memref<32x32xf32, #tpu.memory_space<vmem>>, vector<32x16xf32>
    tpu.vector_store %arg13[%c0_131, %c16], %254 {strides = array<i32>} : memref<32x32xf32, #tpu.memory_space<vmem>>, vector<32x16xf32>,
    %c0_132 = arith.constant 0 : index
    %c0_133 = arith.constant 0 : index
    %256 = vector.load %arg13[%c0_132, %c0_133] : memref<32x32xf32, #tpu.memory_space<vmem>>, vector<32x32xf32>
    %cst_134 = arith.constant 0.000000e+00 : f32
    %257 = vector.broadcast %cst_134 : f32 to vector<32x32xf32>
    %258 = arith.cmpf ogt, %256, %257 : vector<32x32xf32>
    %cst_135 = arith.constant 0.000000e+00 : f32
    %259 = vector.broadcast %cst_135 : f32 to vector<32x32xf32>
    %260 = arith.minimumf %256, %259 : vector<32x32xf32>
    %261 = math.exp %260 : vector<32x32xf32>
    %cst_136 = arith.constant 1.000000e+00 : f32
    %262 = vector.broadcast %cst_136 : f32 to vector<32x32xf32>
    %263 = arith.subf %261, %262 : vector<32x32xf32>
    %264 = arith.select %258, %256, %263 : vector<32x32xi1>, vector<32x32xf32>
    %c0_137 = arith.constant 0 : index
    %c0_138 = arith.constant 0 : index
    %265 = vector.load %arg6[%c0_137, %c0_138] : memref<32x66xf32, #tpu.memory_space<vmem>>, vector<32x66xf32>
    %cst_139 = arith.constant dense<0.000000e+00> : vector<32x66xf32>
    %266 = tpu.matmul %264, %265, %cst_139 {dimension_numbers = #tpu.dot_dimension_numbers<[1], [0], [0], [1], [0, 0, 1, 1], [], []>} : vector<32x32xf32>, vector<32x66xf32>, vector<32x66xf32> -> vector<32x66xf32>
    %267 = vector.extract_strided_slice %266 {offsets = [0, 0], sizes = [32, 32], strides = [1, 1]} : vector<32x66xf32> to vector<32x32xf32>
    %268 = vector.extract_strided_slice %266 {offsets = [0, 32], sizes = [32, 32], strides = [1, 1]} : vector<32x66xf32> to vector<32x32xf32>
    %269 = vector.extract_strided_slice %266 {offsets = [0, 64], sizes = [32, 2], strides = [1, 1]} : vector<32x66xf32> to vector<32x2xf32>
    %c0_140 = arith.constant 0 : index
    %c0_141 = arith.constant 0 : index
    %270 = vector.load %arg7[%c0_140, %c0_141] : memref<2x32xf32, #tpu.memory_space<vmem>>, vector<2x32xf32>
    %cst_142 = arith.constant dense<0.000000e+00> : vector<2x32xf32>
    %271 = tpu.matmul %270, %264, %cst_142 {dimension_numbers = #tpu.dot_dimension_numbers<[1], [1], [0], [0], [0, 0, 1, 0], [], []>} : vector<2x32xf32>, vector<32x32xf32>, vector<2x32xf32> -> vector<2x32xf32>
    %272 = vector.extract_strided_slice %267 {offsets = [0, 0], sizes = [32, 16], strides = [1, 1]} : vector<32x32xf32> to vector<32x16xf32>
    %273 = vector.extract_strided_slice %271 {offsets = [0, 0], sizes = [1, 32], strides = [1, 1]} : vector<2x32xf32> to vector<1x32xf32>
    %274 = vector.extract_strided_slice %269 {offsets = [0, 0], sizes = [32, 1], strides = [1, 1]} : vector<32x2xf32> to vector<32x1xf32>
    %275 = vector.broadcast %274 : vector<32x1xf32> to vector<32x32xf32>
    %276 = vector.broadcast %273 : vector<1x32xf32> to vector<32x32xf32>
    %277 = arith.addf %275, %276 : vector<32x32xf32>
    %278 = arith.addf %277, %191 : vector<32x32xf32>
    %cst_143 = arith.constant 2.000000e-01 : f32
    %279 = vector.broadcast %cst_143 : f32 to vector<32x32xf32>
    %280 = arith.mulf %279, %278 : vector<32x32xf32>
    %281 = arith.maximumf %278, %280 : vector<32x32xf32>
    %282 = arith.addf %281, %0 : vector<32x32xf32>
    %cst_144 = arith.constant dense<0xFF800000> : vector<32xf32>
    %283 = vector.multi_reduction <maximumf>, %282, %cst_144 [1] : vector<32x32xf32> to vector<32xf32>
    %284 = vector.shape_cast %283 : vector<32xf32> to vector<32x1xf32>
    %285 = vector.broadcast %284 : vector<32x1xf32> to vector<32x32xf32>
    %286 = arith.subf %282, %285 : vector<32x32xf32>
    %287 = math.exp %286 : vector<32x32xf32>
    %cst_145 = arith.constant dense<0.000000e+00> : vector<32xf32>
    %288 = vector.multi_reduction <add>, %287, %cst_145 [1] : vector<32x32xf32> to vector<32xf32>
    %289 = vector.shape_cast %288 : vector<32xf32> to vector<32x1xf32>
    %290 = tpu.reciprocal %289 {approx = true} : vector<32x1xf32> -> vector<32x1xf32>
    %cst_146 = arith.constant dense<0.000000e+00> : vector<32x16xf32>
    %291 = tpu.matmul %287, %272, %cst_146 {dimension_numbers = #tpu.dot_dimension_numbers<[1], [0], [0], [1], [0, 0, 1, 1], [], []>} : vector<32x32xf32>, vector<32x16xf32>, vector<32x16xf32> -> vector<32x16xf32>
    %292 = vector.broadcast %290 : vector<32x1xf32> to vector<32x16xf32>
    %293 = arith.mulf %291, %292 : vector<32x16xf32>
    %294 = vector.extract_strided_slice %268 {offsets = [0, 0], sizes = [32, 16], strides = [1, 1]} : vector<32x32xf32> to vector<32x16xf32>
    %295 = arith.addf %293, %294 : vector<32x16xf32>
    %c0_147 = arith.constant 0 : index
    %c0_148 = arith.constant 0 : index
    %296 = vector.load %arg13[%c0_147, %c0_148] : memref<32x32xf32, #tpu.memory_space<vmem>>, vector<32x16xf32>
    tpu.vector_store %arg13[%c0_147, %c0_148], %295 {strides = array<i32>} : memref<32x32xf32, #tpu.memory_space<vmem>>, vector<32x16xf32>,
    %297 = vector.extract_strided_slice %267 {offsets = [0, 16], sizes = [32, 16], strides = [1, 1]} : vector<32x32xf32> to vector<32x16xf32>
    %298 = vector.extract_strided_slice %271 {offsets = [1, 0], sizes = [1, 32], strides = [1, 1]} : vector<2x32xf32> to vector<1x32xf32>
    %299 = vector.extract_strided_slice %269 {offsets = [0, 1], sizes = [32, 1], strides = [1, 1]} : vector<32x2xf32> to vector<32x1xf32>
    %300 = vector.broadcast %299 : vector<32x1xf32> to vector<32x32xf32>
    %301 = vector.broadcast %298 : vector<1x32xf32> to vector<32x32xf32>
    %302 = arith.addf %300, %301 : vector<32x32xf32>
    %303 = arith.addf %302, %195 : vector<32x32xf32>
    %cst_149 = arith.constant 2.000000e-01 : f32
    %304 = vector.broadcast %cst_149 : f32 to vector<32x32xf32>
    %305 = arith.mulf %304, %303 : vector<32x32xf32>
    %306 = arith.maximumf %303, %305 : vector<32x32xf32>
    %307 = arith.addf %306, %0 : vector<32x32xf32>
    %cst_150 = arith.constant dense<0xFF800000> : vector<32xf32>
    %308 = vector.multi_reduction <maximumf>, %307, %cst_150 [1] : vector<32x32xf32> to vector<32xf32>
    %309 = vector.shape_cast %308 : vector<32xf32> to vector<32x1xf32>
    %310 = vector.broadcast %309 : vector<32x1xf32> to vector<32x32xf32>
    %311 = arith.subf %307, %310 : vector<32x32xf32>
    %312 = math.exp %311 : vector<32x32xf32>
    %cst_151 = arith.constant dense<0.000000e+00> : vector<32xf32>
    %313 = vector.multi_reduction <add>, %312, %cst_151 [1] : vector<32x32xf32> to vector<32xf32>
    %314 = vector.shape_cast %313 : vector<32xf32> to vector<32x1xf32>
    %315 = tpu.reciprocal %314 {approx = true} : vector<32x1xf32> -> vector<32x1xf32>
    %cst_152 = arith.constant dense<0.000000e+00> : vector<32x16xf32>
    %316 = tpu.matmul %312, %297, %cst_152 {dimension_numbers = #tpu.dot_dimension_numbers<[1], [0], [0], [1], [0, 0, 1, 1], [], []>} : vector<32x32xf32>, vector<32x16xf32>, vector<32x16xf32> -> vector<32x16xf32>
    %317 = vector.broadcast %315 : vector<32x1xf32> to vector<32x16xf32>
    %318 = arith.mulf %316, %317 : vector<32x16xf32>
    %319 = vector.extract_strided_slice %268 {offsets = [0, 16], sizes = [32, 16], strides = [1, 1]} : vector<32x32xf32> to vector<32x16xf32>
    %320 = arith.addf %318, %319 : vector<32x16xf32>
    %c0_153 = arith.constant 0 : index
    %c16_154 = arith.constant 16 : index
    %321 = vector.load %arg13[%c0_153, %c16_154] : memref<32x32xf32, #tpu.memory_space<vmem>>, vector<32x16xf32>
    tpu.vector_store %arg13[%c0_153, %c16_154], %320 {strides = array<i32>} : memref<32x32xf32, #tpu.memory_space<vmem>>, vector<32x16xf32>,
    %c0_155 = arith.constant 0 : index
    %c0_156 = arith.constant 0 : index
    %322 = vector.load %arg13[%c0_155, %c0_156] : memref<32x32xf32, #tpu.memory_space<vmem>>, vector<32x32xf32>
    %cst_157 = arith.constant 0.000000e+00 : f32
    %323 = vector.broadcast %cst_157 : f32 to vector<32x32xf32>
    %324 = arith.cmpf ogt, %322, %323 : vector<32x32xf32>
    %cst_158 = arith.constant 0.000000e+00 : f32
    %325 = vector.broadcast %cst_158 : f32 to vector<32x32xf32>
    %326 = arith.minimumf %322, %325 : vector<32x32xf32>
    %327 = math.exp %326 : vector<32x32xf32>
    %cst_159 = arith.constant 1.000000e+00 : f32
    %328 = vector.broadcast %cst_159 : f32 to vector<32x32xf32>
    %329 = arith.subf %327, %328 : vector<32x32xf32>
    %330 = arith.select %324, %322, %329 : vector<32x32xi1>, vector<32x32xf32>
    %c0_160 = arith.constant 0 : index
    %c0_161 = arith.constant 0 : index
    %331 = vector.load %arg9[%c0_160, %c0_161] : memref<32x18xf32, #tpu.memory_space<vmem>>, vector<32x18xf32>
    %cst_162 = arith.constant dense<0.000000e+00> : vector<32x18xf32>
    %332 = tpu.matmul %330, %331, %cst_162 {dimension_numbers = #tpu.dot_dimension_numbers<[1], [0], [0], [1], [0, 0, 1, 1], [], []>} : vector<32x32xf32>, vector<32x18xf32>, vector<32x18xf32> -> vector<32x18xf32>
    %333 = vector.extract_strided_slice %332 {offsets = [0, 0], sizes = [32, 8], strides = [1, 1]} : vector<32x18xf32> to vector<32x8xf32>
    %334 = vector.extract_strided_slice %332 {offsets = [0, 8], sizes = [32, 8], strides = [1, 1]} : vector<32x18xf32> to vector<32x8xf32>
    %335 = vector.extract_strided_slice %332 {offsets = [0, 16], sizes = [32, 2], strides = [1, 1]} : vector<32x18xf32> to vector<32x2xf32>
    %c0_163 = arith.constant 0 : index
    %c0_164 = arith.constant 0 : index
    %336 = vector.load %arg10[%c0_163, %c0_164] : memref<2x32xf32, #tpu.memory_space<vmem>>, vector<2x32xf32>
    %cst_165 = arith.constant dense<0.000000e+00> : vector<2x32xf32>
    %337 = tpu.matmul %336, %330, %cst_165 {dimension_numbers = #tpu.dot_dimension_numbers<[1], [1], [0], [0], [0, 0, 1, 0], [], []>} : vector<2x32xf32>, vector<32x32xf32>, vector<2x32xf32> -> vector<2x32xf32>
    %338 = vector.extract_strided_slice %333 {offsets = [0, 0], sizes = [32, 4], strides = [1, 1]} : vector<32x8xf32> to vector<32x4xf32>
    %339 = vector.extract_strided_slice %337 {offsets = [0, 0], sizes = [1, 32], strides = [1, 1]} : vector<2x32xf32> to vector<1x32xf32>
    %340 = vector.extract_strided_slice %335 {offsets = [0, 0], sizes = [32, 1], strides = [1, 1]} : vector<32x2xf32> to vector<32x1xf32>
    %341 = vector.broadcast %340 : vector<32x1xf32> to vector<32x32xf32>
    %342 = vector.broadcast %339 : vector<1x32xf32> to vector<32x32xf32>
    %343 = arith.addf %341, %342 : vector<32x32xf32>
    %344 = arith.addf %343, %199 : vector<32x32xf32>
    %cst_166 = arith.constant 2.000000e-01 : f32
    %345 = vector.broadcast %cst_166 : f32 to vector<32x32xf32>
    %346 = arith.mulf %345, %344 : vector<32x32xf32>
    %347 = arith.maximumf %344, %346 : vector<32x32xf32>
    %348 = arith.addf %347, %0 : vector<32x32xf32>
    %cst_167 = arith.constant dense<0xFF800000> : vector<32xf32>
    %349 = vector.multi_reduction <maximumf>, %348, %cst_167 [1] : vector<32x32xf32> to vector<32xf32>
    %350 = vector.shape_cast %349 : vector<32xf32> to vector<32x1xf32>
    %351 = vector.broadcast %350 : vector<32x1xf32> to vector<32x32xf32>
    %352 = arith.subf %348, %351 : vector<32x32xf32>
    %353 = math.exp %352 : vector<32x32xf32>
    %cst_168 = arith.constant dense<0.000000e+00> : vector<32xf32>
    %354 = vector.multi_reduction <add>, %353, %cst_168 [1] : vector<32x32xf32> to vector<32xf32>
    %355 = vector.shape_cast %354 : vector<32xf32> to vector<32x1xf32>
    %356 = tpu.reciprocal %355 {approx = true} : vector<32x1xf32> -> vector<32x1xf32>
    %cst_169 = arith.constant dense<0.000000e+00> : vector<32x4xf32>
    %357 = tpu.matmul %353, %338, %cst_169 {dimension_numbers = #tpu.dot_dimension_numbers<[1], [0], [0], [1], [0, 0, 1, 1], [], []>} : vector<32x32xf32>, vector<32x4xf32>, vector<32x4xf32> -> vector<32x4xf32>
    %358 = vector.broadcast %356 : vector<32x1xf32> to vector<32x4xf32>
    %359 = arith.mulf %357, %358 : vector<32x4xf32>
    %360 = vector.extract_strided_slice %334 {offsets = [0, 0], sizes = [32, 4], strides = [1, 1]} : vector<32x8xf32> to vector<32x4xf32>
    %361 = arith.addf %359, %360 : vector<32x4xf32>
    %362 = vector.extract_strided_slice %333 {offsets = [0, 4], sizes = [32, 4], strides = [1, 1]} : vector<32x8xf32> to vector<32x4xf32>
    %363 = vector.extract_strided_slice %337 {offsets = [1, 0], sizes = [1, 32], strides = [1, 1]} : vector<2x32xf32> to vector<1x32xf32>
    %364 = vector.extract_strided_slice %335 {offsets = [0, 1], sizes = [32, 1], strides = [1, 1]} : vector<32x2xf32> to vector<32x1xf32>
    %365 = vector.broadcast %364 : vector<32x1xf32> to vector<32x32xf32>
    %366 = vector.broadcast %363 : vector<1x32xf32> to vector<32x32xf32>
    %367 = arith.addf %365, %366 : vector<32x32xf32>
    %368 = arith.addf %367, %203 : vector<32x32xf32>
    %cst_170 = arith.constant 2.000000e-01 : f32
    %369 = vector.broadcast %cst_170 : f32 to vector<32x32xf32>
    %370 = arith.mulf %369, %368 : vector<32x32xf32>
    %371 = arith.maximumf %368, %370 : vector<32x32xf32>
    %372 = arith.addf %371, %0 : vector<32x32xf32>
    %cst_171 = arith.constant dense<0xFF800000> : vector<32xf32>
    %373 = vector.multi_reduction <maximumf>, %372, %cst_171 [1] : vector<32x32xf32> to vector<32xf32>
    %374 = vector.shape_cast %373 : vector<32xf32> to vector<32x1xf32>
    %375 = vector.broadcast %374 : vector<32x1xf32> to vector<32x32xf32>
    %376 = arith.subf %372, %375 : vector<32x32xf32>
    %377 = math.exp %376 : vector<32x32xf32>
    %cst_172 = arith.constant dense<0.000000e+00> : vector<32xf32>
    %378 = vector.multi_reduction <add>, %377, %cst_172 [1] : vector<32x32xf32> to vector<32xf32>
    %379 = vector.shape_cast %378 : vector<32xf32> to vector<32x1xf32>
    %380 = tpu.reciprocal %379 {approx = true} : vector<32x1xf32> -> vector<32x1xf32>
    %cst_173 = arith.constant dense<0.000000e+00> : vector<32x4xf32>
    %381 = tpu.matmul %377, %362, %cst_173 {dimension_numbers = #tpu.dot_dimension_numbers<[1], [0], [0], [1], [0, 0, 1, 1], [], []>} : vector<32x32xf32>, vector<32x4xf32>, vector<32x4xf32> -> vector<32x4xf32>
    %382 = vector.broadcast %380 : vector<32x1xf32> to vector<32x4xf32>
    %383 = arith.mulf %381, %382 : vector<32x4xf32>
    %384 = vector.extract_strided_slice %334 {offsets = [0, 4], sizes = [32, 4], strides = [1, 1]} : vector<32x8xf32> to vector<32x4xf32>
    %385 = arith.addf %383, %384 : vector<32x4xf32>
    %386 = arith.addf %361, %385 : vector<32x4xf32>
    %cst_174 = arith.constant 5.000000e-01 : f32
    %387 = vector.broadcast %cst_174 : f32 to vector<32x4xf32>
    %388 = arith.mulf %386, %387 : vector<32x4xf32>
    %c0_175 = arith.constant 0 : index
    %c0_176 = arith.constant 0 : index
    %389 = vector.load %arg12[%c0_175, %c0_176] : memref<32x4xf32, #tpu.memory_space<vmem>>, vector<32x4xf32>
    tpu.vector_store %arg12[%c0_175, %c0_176], %388 {strides = array<i32>} : memref<32x4xf32, #tpu.memory_space<vmem>>, vector<32x4xf32>,
    return
  }
}

</mosaic_0001>

<llo_original>
// kernel: tpu_custom_call.1
$region0: #{tpu_custom_call.1}
  #allocation0 [shape = 'u32[]', space=smem, size = 0x4, offset = 0x4, fixed_abs, tag = 'smem constant byte address 0x4 - core index']
  #allocation1 [shape = 'u32[144,128]{1,0:T(1,128)}', space=vmem, size = 0x12000, scoped, tag = 'internal scratch']
  #allocation2 [shape = 'f32[32,32]{1,0:T(8,128)}', space=vmem, size = 0x4000, scoped, tag = 'scratch operand']
  %s0 = inlined_call_operand.vmem [shape: f32[32,16], index: 0, kind: input, shape index: {}]
  %s1 = inlined_call_operand.hbm [shape: f32[8,32,32], index: 1, kind: input, shape index: {}]
  %s2 = inlined_call_operand.vmem [shape: f32[32,32], index: 2, kind: input, shape index: {}]
  %s3 = inlined_call_operand.vmem [shape: f32[16,34], index: 3, kind: input, shape index: {}]
  %s4 = inlined_call_operand.vmem [shape: f32[2,16], index: 4, kind: input, shape index: {}]
  %s5 = inlined_call_operand.vmem [shape: f32[8,2], index: 5, kind: input, shape index: {}]
  %s6 = inlined_call_operand.vmem [shape: f32[32,66], index: 6, kind: input, shape index: {}]
  %s7 = inlined_call_operand.vmem [shape: f32[2,32], index: 7, kind: input, shape index: {}]
  %s8 = inlined_call_operand.vmem [shape: f32[8,2], index: 8, kind: input, shape index: {}]
  %s9 = inlined_call_operand.vmem [shape: f32[32,18], index: 9, kind: input, shape index: {}]
  %s10 = inlined_call_operand.vmem [shape: f32[2,32], index: 10, kind: input, shape index: {}]
  %s11 = inlined_call_operand.vmem [shape: f32[8,2], index: 11, kind: input, shape index: {}]
  %s12 = inlined_call_operand.vmem [shape: f32[32,4], index: 12, kind: output, shape index: {}]
  %s13 = sld [smem:[#allocation0]]
  $region74: #{tpu_custom_call.1} parent=0
    _
  %s15 = ssub.s32 1, %s13
  %s16 = scalar_select 0, %s15, %s13
  $region1: #{tpu_custom_call.1} parent=0
    #allocation3 [shape = 'u8[131072]{0}', space=vmem, size = 0x20000, scoped, tag = 'input window, operand 1, single buffered']
    #allocation4 [shape = 's32[1]{0}', space=sflag, size = 0x4, scoped, tag = 'scoped memory for tpu_custom_call.1']
    #allocation5 [shape = 's32[1]{0}', space=sflag, size = 0x4, scoped, tag = 'scoped memory for tpu_custom_call.1']
    #allocation6 [shape = 'u8[4096]{0}', space=smem, size = 0x1000, scoped, tag = 'input window, operand 5, single buffered']
    #allocation7 [shape = 'u8[4096]{0}', space=smem, size = 0x1000, scoped, tag = 'input window, operand 8, single buffered']
    #allocation8 [shape = 's32[1]{0}', space=sflag, size = 0x4, scoped, tag = 'scoped memory for tpu_custom_call.1']
    #allocation9 [shape = 'u8[4096]{0}', space=smem, size = 0x1000, scoped, tag = 'input window, operand 11, single buffered']
    %17 = vsyncpa [#allocation4], 0
    %18 = vsyncpa [#allocation5], 0
    %19 = vsyncpa [#allocation8], 0
    // Predicated region
    $region2: #{tpu_custom_call.1} parent=1 // pred_check
      _
    $region3: #{tpu_custom_call.1} parent=1 // pred_check_branch
      %21 = sbr.rel (0) target = $region5
    $region4: #{tpu_custom_call.1} parent=1 // pred_region
      _
    $region5: #{tpu_custom_call.1} parent=1 // pred_fallthru
      _
    // Predicated region
    $region6: #{tpu_custom_call.1} parent=1 // pred_check
      _
    $region7: #{tpu_custom_call.1} parent=1 // pred_check_branch
      %23 = sbr.rel (0) target = $region9
    $region8: #{tpu_custom_call.1} parent=1 // pred_region
      %s25 = ssub.s32 4096, 4096
      %26 = vsyncadd [#allocation4], %s25
      %s27 = sshll.u32 [#allocation3], 4
      %s28 = int_to_ptr.vmem [resolvable:$true] %s27
      %33 = dma.hbm_to_vmem [thread:$0]  %s1, 4096, %s28, [#allocation4], 128, 128, 8
    $region9: #{tpu_custom_call.1} parent=1 // pred_fallthru
      _
    // Predicated region
    $region10: #{tpu_custom_call.1} parent=1 // pred_check
      _
    $region11: #{tpu_custom_call.1} parent=1 // pred_check_branch
      %35 = sbr.rel (0) target = $region13
    $region12: #{tpu_custom_call.1} parent=1 // pred_region
      _
    $region13: #{tpu_custom_call.1} parent=1 // pred_fallthru
      _
    // Predicated region
    $region14: #{tpu_custom_call.1} parent=1 // pred_check
      _
    $region15: #{tpu_custom_call.1} parent=1 // pred_check_branch
      %37 = sbr.rel (0) target = $region17
    $region16: #{tpu_custom_call.1} parent=1 // pred_region
      _
    $region17: #{tpu_custom_call.1} parent=1 // pred_fallthru
      _
    // Predicated region
    $region18: #{tpu_custom_call.1} parent=1 // pred_check
      _
    $region19: #{tpu_custom_call.1} parent=1 // pred_check_branch
      %39 = sbr.rel (0) target = $region21
    $region20: #{tpu_custom_call.1} parent=1 // pred_region
      _
    $region21: #{tpu_custom_call.1} parent=1 // pred_fallthru
      _
    // Predicated region
    $region22: #{tpu_custom_call.1} parent=1 // pred_check
      _
    $region23: #{tpu_custom_call.1} parent=1 // pred_check_branch
      %41 = sbr.rel (0) target = $region25
    $region24: #{tpu_custom_call.1} parent=1 // pred_region
      %s43 = ssub.s32 128, 128
      %44 = vsyncadd [#allocation5], %s43
      %s46 = sshll.u32 %s5, 4
      %s47 = int_to_ptr.vmem [resolvable:$true] %s46
      %49 = dma.vmem_to_smem %s47, 128, [#allocation6], [#allocation5]
    $region25: #{tpu_custom_call.1} parent=1 // pred_fallthru
      _
    // Predicated region
    $region26: #{tpu_custom_call.1} parent=1 // pred_check
      _
    $region27: #{tpu_custom_call.1} parent=1 // pred_check_branch
      %51 = sbr.rel (0) target = $region29
    $region28: #{tpu_custom_call.1} parent=1 // pred_region
      _
    $region29: #{tpu_custom_call.1} parent=1 // pred_fallthru
      _
    // Predicated region
    $region30: #{tpu_custom_call.1} parent=1 // pred_check
      _
    $region31: #{tpu_custom_call.1} parent=1 // pred_check_branch
      %53 = sbr.rel (0) target = $region33
    $region32: #{tpu_custom_call.1} parent=1 // pred_region
      _
    $region33: #{tpu_custom_call.1} parent=1 // pred_fallthru
      _
    // Predicated region
    $region34: #{tpu_custom_call.1} parent=1 // pred_check
      _
    $region35: #{tpu_custom_call.1} parent=1 // pred_check_branch
      %55 = sbr.rel (0) target = $region37
    $region36: #{tpu_custom_call.1} parent=1 // pred_region
      %s57 = ssub.s32 128, 128
      %58 = vsyncadd [#allocation8], %s57
      %s60 = sshll.u32 %s8, 4
      %s61 = int_to_ptr.vmem [resolvable:$true] %s60
      %63 = dma.vmem_to_smem %s61, 128, [#allocation7], [#allocation8]
    $region37: #{tpu_custom_call.1} parent=1 // pred_fallthru
      _
    // Predicated region
    $region38: #{tpu_custom_call.1} parent=1 // pred_check
      _
    $region39: #{tpu_custom_call.1} parent=1 // pred_check_branch
      %65 = sbr.rel (0) target = $region41
    $region40: #{tpu_custom_call.1} parent=1 // pred_region
      _
    $region41: #{tpu_custom_call.1} parent=1 // pred_fallthru
      _
    // Predicated region
    $region42: #{tpu_custom_call.1} parent=1 // pred_check
      _
    $region43: #{tpu_custom_call.1} parent=1 // pred_check_branch
      %67 = sbr.rel (0) target = $region45
    $region44: #{tpu_custom_call.1} parent=1 // pred_region
      _
    $region45: #{tpu_custom_call.1} parent=1 // pred_fallthru
      _
    // Predicated region
    $region46: #{tpu_custom_call.1} parent=1 // pred_check
      _
    $region47: #{tpu_custom_call.1} parent=1 // pred_check_branch
      %69 = sbr.rel (0) target = $region49
    $region48: #{tpu_custom_call.1} parent=1 // pred_region
      %s71 = ssub.s32 128, 128
      %72 = vsyncadd [#allocation8], %s71
      %s74 = sshll.u32 %s11, 4
      %s75 = int_to_ptr.vmem [resolvable:$true] %s74
      %77 = dma.vmem_to_smem %s75, 128, [#allocation9], [#allocation8]
    $region49: #{tpu_custom_call.1} parent=1 // pred_fallthru
      _
    // Predicated region
    $region50: #{tpu_custom_call.1} parent=1 // pred_check
      _
    $region51: #{tpu_custom_call.1} parent=1 // pred_check_branch
      %79 = sbr.rel (0) target = $region53
    $region52: #{tpu_custom_call.1} parent=1 // pred_region
      %80 = dma.done [#allocation4], 4096
    $region53: #{tpu_custom_call.1} parent=1 // pred_fallthru
      _
    // Predicated region
    $region54: #{tpu_custom_call.1} parent=1 // pred_check
      _
    $region55: #{tpu_custom_call.1} parent=1 // pred_check_branch
      %82 = sbr.rel (0) target = $region57
    $region56: #{tpu_custom_call.1} parent=1 // pred_region
      %83 = dma.done [#allocation5], 128
    $region57: #{tpu_custom_call.1} parent=1 // pred_fallthru
      _
    // Predicated region
    $region58: #{tpu_custom_call.1} parent=1 // pred_check
      _
    $region59: #{tpu_custom_call.1} parent=1 // pred_check_branch
      %85 = sbr.rel (0) target = $region61
    $region60: #{tpu_custom_call.1} parent=1 // pred_region
      %86 = dma.done [#allocation8], 128
    $region61: #{tpu_custom_call.1} parent=1 // pred_fallthru
      _
    // Predicated region
    $region62: #{tpu_custom_call.1} parent=1 // pred_check
      _
    $region63: #{tpu_custom_call.1} parent=1 // pred_check_branch
      %88 = sbr.rel (0) target = $region65
    $region64: #{tpu_custom_call.1} parent=1 // pred_region
      %89 = dma.done [#allocation8], 128
    $region65: #{tpu_custom_call.1} parent=1 // pred_fallthru
      _
    %90 = sfence
    %v91 = vld [vmem:[%s2] sm:$0xff]
    %v92 = vld [vmem:[%s2 + $0x8] sm:$0xff]
    %v93 = vld [vmem:[%s2 + $0x10] sm:$0xff]
    %v94 = vld [vmem:[%s2 + $0x18] sm:$0xff]
    %v95 = vld [vmem:[%s0] sm:$0xff]
    %v96 = vld [vmem:[%s0 + $0x8] sm:$0xff]
    %v97 = vld [vmem:[%s0 + $0x10] sm:$0xff]
    %v98 = vld [vmem:[%s0 + $0x18] sm:$0xff]
    %v99 = vld [vmem:[#allocation3] sm:$0xff]
    %v100 = vld [vmem:[#allocation3 + $0x8] sm:$0xff]
    %v101 = vld [vmem:[#allocation3 + $0x10] sm:$0xff]
    %v102 = vld [vmem:[#allocation3 + $0x18] sm:$0xff]
    %s103 = sld [smem:[#allocation6]]
    %v104 = vstv %s103
    %v105 = vmul.f32 %v104, %v99
    %v106 = vmul.f32 %v104, %v100
    %v107 = vmul.f32 %v104, %v101
    %v108 = vmul.f32 %v104, %v102
    %s109 = sld [smem:[#allocation6 + $0x1]]
    %v110 = vstv %s109
    %v111 = vmul.f32 %v110, %v99
    %v112 = vmul.f32 %v110, %v100
    %v113 = vmul.f32 %v110, %v101
    %v114 = vmul.f32 %v110, %v102
    %s115 = sld [smem:[#allocation7]]
    %v116 = vstv %s115
    %v117 = vmul.f32 %v116, %v99
    %v118 = vmul.f32 %v116, %v100
    %v119 = vmul.f32 %v116, %v101
    %v120 = vmul.f32 %v116, %v102
    %s121 = sld [smem:[#allocation7 + $0x1]]
    %v122 = vstv %s121
    %v123 = vmul.f32 %v122, %v99
    %v124 = vmul.f32 %v122, %v100
    %v125 = vmul.f32 %v122, %v101
    %v126 = vmul.f32 %v122, %v102
    %s127 = sld [smem:[#allocation9]]
    %v128 = vstv %s127
    %v129 = vmul.f32 %v128, %v99
    %v130 = vmul.f32 %v128, %v100
    %v131 = vmul.f32 %v128, %v101
    %v132 = vmul.f32 %v128, %v102
    %s133 = sld [smem:[#allocation9 + $0x1]]
    %v134 = vstv %s133
    %v135 = vmul.f32 %v134, %v99
    %v136 = vmul.f32 %v134, %v100
    %v137 = vmul.f32 %v134, %v101
    %v138 = vmul.f32 %v134, %v102
    %s139 = scalar_lea.vmem [#allocation3], 32
    %v140 = vld [vmem:[%s139] sm:$0xff]
    %v141 = vld [vmem:[%s139 + $0x8] sm:$0xff]
    %v142 = vld [vmem:[%s139 + $0x10] sm:$0xff]
    %v143 = vld [vmem:[%s139 + $0x18] sm:$0xff]
    %s144 = sld [smem:[#allocation6 + $0x80]]
    %v145 = vstv %s144
    %v146 = vmul.f32 %v145, %v140
    %v147 = vmul.f32 %v145, %v141
    %v148 = vmul.f32 %v145, %v142
    %v149 = vmul.f32 %v145, %v143
    %v150 = vadd.f32 %v105, %v146
    %v151 = vadd.f32 %v106, %v147
    %v152 = vadd.f32 %v107, %v148
    %v153 = vadd.f32 %v108, %v149
    %s154 = sld [smem:[#allocation6 + $0x81]]
    %v155 = vstv %s154
    %v156 = vmul.f32 %v155, %v140
    %v157 = vmul.f32 %v155, %v141
    %v158 = vmul.f32 %v155, %v142
    %v159 = vmul.f32 %v155, %v143
    %v160 = vadd.f32 %v111, %v156
    %v161 = vadd.f32 %v112, %v157
    %v162 = vadd.f32 %v113, %v158
    %v163 = vadd.f32 %v114, %v159
    %s164 = sld [smem:[#allocation7 + $0x80]]
    %v165 = vstv %s164
    %v166 = vmul.f32 %v165, %v140
    %v167 = vmul.f32 %v165, %v141
    %v168 = vmul.f32 %v165, %v142
    %v169 = vmul.f32 %v165, %v143
    %v170 = vadd.f32 %v117, %v166
    %v171 = vadd.f32 %v118, %v167
    %v172 = vadd.f32 %v119, %v168
    %v173 = vadd.f32 %v120, %v169
    %s174 = sld [smem:[#allocation7 + $0x81]]
    %v175 = vstv %s174
    %v176 = vmul.f32 %v175, %v140
    %v177 = vmul.f32 %v175, %v141
    %v178 = vmul.f32 %v175, %v142
    %v179 = vmul.f32 %v175, %v143
    %v180 = vadd.f32 %v123, %v176
    %v181 = vadd.f32 %v124, %v177
    %v182 = vadd.f32 %v125, %v178
    %v183 = vadd.f32 %v126, %v179
    %s184 = sld [smem:[#allocation9 + $0x80]]
    %v185 = vstv %s184
    %v186 = vmul.f32 %v185, %v140
    %v187 = vmul.f32 %v185, %v141
    %v188 = vmul.f32 %v185, %v142
    %v189 = vmul.f32 %v185, %v143
    %v190 = vadd.f32 %v129, %v186
    %v191 = vadd.f32 %v130, %v187
    %v192 = vadd.f32 %v131, %v188
    %v193 = vadd.f32 %v132, %v189
    %s194 = sld [smem:[#allocation9 + $0x81]]
    %v195 = vstv %s194
    %v196 = vmul.f32 %v195, %v140
    %v197 = vmul.f32 %v195, %v141
    %v198 = vmul.f32 %v195, %v142
    %v199 = vmul.f32 %v195, %v143
    %v200 = vadd.f32 %v135, %v196
    %v201 = vadd.f32 %v136, %v197
    %v202 = vadd.f32 %v137, %v198
    %v203 = vadd.f32 %v138, %v199
    %s204 = scalar_lea.vmem [#allocation3], 64
    %v205 = vld [vmem:[%s204] sm:$0xff]
    %v206 = vld [vmem:[%s204 + $0x8] sm:$0xff]
    %v207 = vld [vmem:[%s204 + $0x10] sm:$0xff]
    %v208 = vld [vmem:[%s204 + $0x18] sm:$0xff]
    %s209 = sld [smem:[#allocation6 + $0x100]]
    %v210 = vstv %s209
    %v211 = vmul.f32 %v210, %v205
    %v212 = vmul.f32 %v210, %v206
    %v213 = vmul.f32 %v210, %v207
    %v214 = vmul.f32 %v210, %v208
    %v215 = vadd.f32 %v150, %v211
    %v216 = vadd.f32 %v151, %v212
    %v217 = vadd.f32 %v152, %v213
    %v218 = vadd.f32 %v153, %v214
    %s219 = sld [smem:[#allocation6 + $0x101]]
    %v220 = vstv %s219
    %v221 = vmul.f32 %v220, %v205
    %v222 = vmul.f32 %v220, %v206
    %v223 = vmul.f32 %v220, %v207
    %v224 = vmul.f32 %v220, %v208
    %v225 = vadd.f32 %v160, %v221
    %v226 = vadd.f32 %v161, %v222
    %v227 = vadd.f32 %v162, %v223
    %v228 = vadd.f32 %v163, %v224
    %s229 = sld [smem:[#allocation7 + $0x100]]
    %v230 = vstv %s229
    %v231 = vmul.f32 %v230, %v205
    %v232 = vmul.f32 %v230, %v206
    %v233 = vmul.f32 %v230, %v207
    %v234 = vmul.f32 %v230, %v208
    %v235 = vadd.f32 %v170, %v231
    %v236 = vadd.f32 %v171, %v232
    %v237 = vadd.f32 %v172, %v233
    %v238 = vadd.f32 %v173, %v234
    %s239 = sld [smem:[#allocation7 + $0x101]]
    %v240 = vstv %s239
    %v241 = vmul.f32 %v240, %v205
    %v242 = vmul.f32 %v240, %v206
    %v243 = vmul.f32 %v240, %v207
    %v244 = vmul.f32 %v240, %v208
    %v245 = vadd.f32 %v180, %v241
    %v246 = vadd.f32 %v181, %v242
    %v247 = vadd.f32 %v182, %v243
    %v248 = vadd.f32 %v183, %v244
    %s249 = sld [smem:[#allocation9 + $0x100]]
    %v250 = vstv %s249
    %v251 = vmul.f32 %v250, %v205
    %v252 = vmul.f32 %v250, %v206
    %v253 = vmul.f32 %v250, %v207
    %v254 = vmul.f32 %v250, %v208
    %v255 = vadd.f32 %v190, %v251
    %v256 = vadd.f32 %v191, %v252
    %v257 = vadd.f32 %v192, %v253
    %v258 = vadd.f32 %v193, %v254
    %s259 = sld [smem:[#allocation9 + $0x101]]
    %v260 = vstv %s259
    %v261 = vmul.f32 %v260, %v205
    %v262 = vmul.f32 %v260, %v206
    %v263 = vmul.f32 %v260, %v207
    %v264 = vmul.f32 %v260, %v208
    %v265 = vadd.f32 %v200, %v261
    %v266 = vadd.f32 %v201, %v262
    %v267 = vadd.f32 %v202, %v263
    %v268 = vadd.f32 %v203, %v264
    %s269 = scalar_lea.vmem [#allocation3], 96
    %v270 = vld [vmem:[%s269] sm:$0xff]
    %v271 = vld [vmem:[%s269 + $0x8] sm:$0xff]
    %v272 = vld [vmem:[%s269 + $0x10] sm:$0xff]
    %v273 = vld [vmem:[%s269 + $0x18] sm:$0xff]
    %s274 = sld [smem:[#allocation6 + $0x180]]
    %v275 = vstv %s274
    %v276 = vmul.f32 %v275, %v270
    %v277 = vmul.f32 %v275, %v271
    %v278 = vmul.f32 %v275, %v272
    %v279 = vmul.f32 %v275, %v273
    %v280 = vadd.f32 %v215, %v276
    %v281 = vadd.f32 %v216, %v277
    %v282 = vadd.f32 %v217, %v278
    %v283 = vadd.f32 %v218, %v279
    %s284 = sld [smem:[#allocation6 + $0x181]]
    %v285 = vstv %s284
    %v286 = vmul.f32 %v285, %v270
    %v287 = vmul.f32 %v285, %v271
    %v288 = vmul.f32 %v285, %v272
    %v289 = vmul.f32 %v285, %v273
    %v290 = vadd.f32 %v225, %v286
    %v291 = vadd.f32 %v226, %v287
    %v292 = vadd.f32 %v227, %v288
    %v293 = vadd.f32 %v228, %v289
    %s294 = sld [smem:[#allocation7 + $0x180]]
    %v295 = vstv %s294
    %v296 = vmul.f32 %v295, %v270
    %v297 = vmul.f32 %v295, %v271
    %v298 = vmul.f32 %v295, %v272
    %v299 = vmul.f32 %v295, %v273
    %v300 = vadd.f32 %v235, %v296
    %v301 = vadd.f32 %v236, %v297
    %v302 = vadd.f32 %v237, %v298
    %v303 = vadd.f32 %v238, %v299
    %s304 = sld [smem:[#allocation7 + $0x181]]
    %v305 = vstv %s304
    %v306 = vmul.f32 %v305, %v270
    %v307 = vmul.f32 %v305, %v271
    %v308 = vmul.f32 %v305, %v272
    %v309 = vmul.f32 %v305, %v273
    %v310 = vadd.f32 %v245, %v306
    %v311 = vadd.f32 %v246, %v307
    %v312 = vadd.f32 %v247, %v308
    %v313 = vadd.f32 %v248, %v309
    %s314 = sld [smem:[#allocation9 + $0x180]]
    %v315 = vstv %s314
    %v316 = vmul.f32 %v315, %v270
    %v317 = vmul.f32 %v315, %v271
    %v318 = vmul.f32 %v315, %v272
    %v319 = vmul.f32 %v315, %v273
    %v320 = vadd.f32 %v255, %v316
    %v321 = vadd.f32 %v256, %v317
    %v322 = vadd.f32 %v257, %v318
    %v323 = vadd.f32 %v258, %v319
    %s324 = sld [smem:[#allocation9 + $0x181]]
    %v325 = vstv %s324
    %v326 = vmul.f32 %v325, %v270
    %v327 = vmul.f32 %v325, %v271
    %v328 = vmul.f32 %v325, %v272
    %v329 = vmul.f32 %v325, %v273
    %v330 = vadd.f32 %v265, %v326
    %v331 = vadd.f32 %v266, %v327
    %v332 = vadd.f32 %v267, %v328
    %v333 = vadd.f32 %v268, %v329
    %s334 = scalar_lea.vmem [#allocation3], 128
    %v335 = vld [vmem:[%s334] sm:$0xff]
    %v336 = vld [vmem:[%s334 + $0x8] sm:$0xff]
    %v337 = vld [vmem:[%s334 + $0x10] sm:$0xff]
    %v338 = vld [vmem:[%s334 + $0x18] sm:$0xff]
    %s339 = sld [smem:[#allocation6 + $0x200]]
    %v340 = vstv %s339
    %v341 = vmul.f32 %v340, %v335
    %v342 = vmul.f32 %v340, %v336
    %v343 = vmul.f32 %v340, %v337
    %v344 = vmul.f32 %v340, %v338
    %v345 = vadd.f32 %v280, %v341
    %v346 = vadd.f32 %v281, %v342
    %v347 = vadd.f32 %v282, %v343
    %v348 = vadd.f32 %v283, %v344
    %s349 = sld [smem:[#allocation6 + $0x201]]
    %v350 = vstv %s349
    %v351 = vmul.f32 %v350, %v335
    %v352 = vmul.f32 %v350, %v336
    %v353 = vmul.f32 %v350, %v337
    %v354 = vmul.f32 %v350, %v338
    %v355 = vadd.f32 %v290, %v351
    %v356 = vadd.f32 %v291, %v352
    %v357 = vadd.f32 %v292, %v353
    %v358 = vadd.f32 %v293, %v354
    %s359 = sld [smem:[#allocation7 + $0x200]]
    %v360 = vstv %s359
    %v361 = vmul.f32 %v360, %v335
    %v362 = vmul.f32 %v360, %v336
    %v363 = vmul.f32 %v360, %v337
    %v364 = vmul.f32 %v360, %v338
    %v365 = vadd.f32 %v300, %v361
    %v366 = vadd.f32 %v301, %v362
    %v367 = vadd.f32 %v302, %v363
    %v368 = vadd.f32 %v303, %v364
    %s369 = sld [smem:[#allocation7 + $0x201]]
    %v370 = vstv %s369
    %v371 = vmul.f32 %v370, %v335
    %v372 = vmul.f32 %v370, %v336
    %v373 = vmul.f32 %v370, %v337
    %v374 = vmul.f32 %v370, %v338
    %v375 = vadd.f32 %v310, %v371
    %v376 = vadd.f32 %v311, %v372
    %v377 = vadd.f32 %v312, %v373
    %v378 = vadd.f32 %v313, %v374
    %s379 = sld [smem:[#allocation9 + $0x200]]
    %v380 = vstv %s379
    %v381 = vmul.f32 %v380, %v335
    %v382 = vmul.f32 %v380, %v336
    %v383 = vmul.f32 %v380, %v337
    %v384 = vmul.f32 %v380, %v338
    %v385 = vadd.f32 %v320, %v381
    %v386 = vadd.f32 %v321, %v382
    %v387 = vadd.f32 %v322, %v383
    %v388 = vadd.f32 %v323, %v384
    %s389 = sld [smem:[#allocation9 + $0x201]]
    %v390 = vstv %s389
    %v391 = vmul.f32 %v390, %v335
    %v392 = vmul.f32 %v390, %v336
    %v393 = vmul.f32 %v390, %v337
    %v394 = vmul.f32 %v390, %v338
    %v395 = vadd.f32 %v330, %v391
    %v396 = vadd.f32 %v331, %v392
    %v397 = vadd.f32 %v332, %v393
    %v398 = vadd.f32 %v333, %v394
    %s399 = scalar_lea.vmem [#allocation3], 160
    %v400 = vld [vmem:[%s399] sm:$0xff]
    %v401 = vld [vmem:[%s399 + $0x8] sm:$0xff]
    %v402 = vld [vmem:[%s399 + $0x10] sm:$0xff]
    %v403 = vld [vmem:[%s399 + $0x18] sm:$0xff]
    %s404 = sld [smem:[#allocation6 + $0x280]]
    %v405 = vstv %s404
    %v406 = vmul.f32 %v405, %v400
    %v407 = vmul.f32 %v405, %v401
    %v408 = vmul.f32 %v405, %v402
    %v409 = vmul.f32 %v405, %v403
    %v410 = vadd.f32 %v345, %v406
    %v411 = vadd.f32 %v346, %v407
    %v412 = vadd.f32 %v347, %v408
    %v413 = vadd.f32 %v348, %v409
    %s414 = sld [smem:[#allocation6 + $0x281]]
    %v415 = vstv %s414
    %v416 = vmul.f32 %v415, %v400
    %v417 = vmul.f32 %v415, %v401
    %v418 = vmul.f32 %v415, %v402
    %v419 = vmul.f32 %v415, %v403
    %v420 = vadd.f32 %v355, %v416
    %v421 = vadd.f32 %v356, %v417
    %v422 = vadd.f32 %v357, %v418
    %v423 = vadd.f32 %v358, %v419
    %s424 = sld [smem:[#allocation7 + $0x280]]
    %v425 = vstv %s424
    %v426 = vmul.f32 %v425, %v400
    %v427 = vmul.f32 %v425, %v401
    %v428 = vmul.f32 %v425, %v402
    %v429 = vmul.f32 %v425, %v403
    %v430 = vadd.f32 %v365, %v426
    %v431 = vadd.f32 %v366, %v427
    %v432 = vadd.f32 %v367, %v428
    %v433 = vadd.f32 %v368, %v429
    %s434 = sld [smem:[#allocation7 + $0x281]]
    %v435 = vstv %s434
    %v436 = vmul.f32 %v435, %v400
    %v437 = vmul.f32 %v435, %v401
    %v438 = vmul.f32 %v435, %v402
    %v439 = vmul.f32 %v435, %v403
    %v440 = vadd.f32 %v375, %v436
    %v441 = vadd.f32 %v376, %v437
    %v442 = vadd.f32 %v377, %v438
    %v443 = vadd.f32 %v378, %v439
    %s444 = sld [smem:[#allocation9 + $0x280]]
    %v445 = vstv %s444
    %v446 = vmul.f32 %v445, %v400
    %v447 = vmul.f32 %v445, %v401
    %v448 = vmul.f32 %v445, %v402
    %v449 = vmul.f32 %v445, %v403
    %v450 = vadd.f32 %v385, %v446
    %v451 = vadd.f32 %v386, %v447
    %v452 = vadd.f32 %v387, %v448
    %v453 = vadd.f32 %v388, %v449
    %s454 = sld [smem:[#allocation9 + $0x281]]
    %v455 = vstv %s454
    %v456 = vmul.f32 %v455, %v400
    %v457 = vmul.f32 %v455, %v401
    %v458 = vmul.f32 %v455, %v402
    %v459 = vmul.f32 %v455, %v403
    %v460 = vadd.f32 %v395, %v456
    %v461 = vadd.f32 %v396, %v457
    %v462 = vadd.f32 %v397, %v458
    %v463 = vadd.f32 %v398, %v459
    %s464 = scalar_lea.vmem [#allocation3], 192
    %v465 = vld [vmem:[%s464] sm:$0xff]
    %v466 = vld [vmem:[%s464 + $0x8] sm:$0xff]
    %v467 = vld [vmem:[%s464 + $0x10] sm:$0xff]
    %v468 = vld [vmem:[%s464 + $0x18] sm:$0xff]
    %s469 = sld [smem:[#allocation6 + $0x300]]
    %v470 = vstv %s469
    %v471 = vmul.f32 %v470, %v465
    %v472 = vmul.f32 %v470, %v466
    %v473 = vmul.f32 %v470, %v467
    %v474 = vmul.f32 %v470, %v468
    %v475 = vadd.f32 %v410, %v471
    %v476 = vadd.f32 %v411, %v472
    %v477 = vadd.f32 %v412, %v473
    %v478 = vadd.f32 %v413, %v474
    %s479 = sld [smem:[#allocation6 + $0x301]]
    %v480 = vstv %s479
    %v481 = vmul.f32 %v480, %v465
    %v482 = vmul.f32 %v480, %v466
    %v483 = vmul.f32 %v480, %v467
    %v484 = vmul.f32 %v480, %v468
    %v485 = vadd.f32 %v420, %v481
    %v486 = vadd.f32 %v421, %v482
    %v487 = vadd.f32 %v422, %v483
    %v488 = vadd.f32 %v423, %v484
    %s489 = sld [smem:[#allocation7 + $0x300]]
    %v490 = vstv %s489
    %v491 = vmul.f32 %v490, %v465
    %v492 = vmul.f32 %v490, %v466
    %v493 = vmul.f32 %v490, %v467
    %v494 = vmul.f32 %v490, %v468
    %v495 = vadd.f32 %v430, %v491
    %v496 = vadd.f32 %v431, %v492
    %v497 = vadd.f32 %v432, %v493
    %v498 = vadd.f32 %v433, %v494
    %s499 = sld [smem:[#allocation7 + $0x301]]
    %v500 = vstv %s499
    %v501 = vmul.f32 %v500, %v465
    %v502 = vmul.f32 %v500, %v466
    %v503 = vmul.f32 %v500, %v467
    %v504 = vmul.f32 %v500, %v468
    %v505 = vadd.f32 %v440, %v501
    %v506 = vadd.f32 %v441, %v502
    %v507 = vadd.f32 %v442, %v503
    %v508 = vadd.f32 %v443, %v504
    %s509 = sld [smem:[#allocation9 + $0x300]]
    %v510 = vstv %s509
    %v511 = vmul.f32 %v510, %v465
    %v512 = vmul.f32 %v510, %v466
    %v513 = vmul.f32 %v510, %v467
    %v514 = vmul.f32 %v510, %v468
    %v515 = vadd.f32 %v450, %v511
    %v516 = vadd.f32 %v451, %v512
    %v517 = vadd.f32 %v452, %v513
    %v518 = vadd.f32 %v453, %v514
    %s519 = sld [smem:[#allocation9 + $0x301]]
    %v520 = vstv %s519
    %v521 = vmul.f32 %v520, %v465
    %v522 = vmul.f32 %v520, %v466
    %v523 = vmul.f32 %v520, %v467
    %v524 = vmul.f32 %v520, %v468
    %v525 = vadd.f32 %v460, %v521
    %v526 = vadd.f32 %v461, %v522
    %v527 = vadd.f32 %v462, %v523
    %v528 = vadd.f32 %v463, %v524
    %s529 = scalar_lea.vmem [#allocation3], 224
    %v530 = vld [vmem:[%s529] sm:$0xff]
    %v531 = vld [vmem:[%s529 + $0x8] sm:$0xff]
    %v532 = vld [vmem:[%s529 + $0x10] sm:$0xff]
    %v533 = vld [vmem:[%s529 + $0x18] sm:$0xff]
    %s534 = sld [smem:[#allocation6 + $0x380]]
    %v535 = vstv %s534
    %v536 = vmul.f32 %v535, %v530
    %v537 = vmul.f32 %v535, %v531
    %v538 = vmul.f32 %v535, %v532
    %v539 = vmul.f32 %v535, %v533
    %v540 = vadd.f32 %v475, %v536
    %v541 = vadd.f32 %v476, %v537
    %v542 = vadd.f32 %v477, %v538
    %v543 = vadd.f32 %v478, %v539
    %s544 = sld [smem:[#allocation6 + $0x381]]
    %v545 = vstv %s544
    %v546 = vmul.f32 %v545, %v530
    %v547 = vmul.f32 %v545, %v531
    %v548 = vmul.f32 %v545, %v532
    %v549 = vmul.f32 %v545, %v533
    %v550 = vadd.f32 %v485, %v546
    %v551 = vadd.f32 %v486, %v547
    %v552 = vadd.f32 %v487, %v548
    %v553 = vadd.f32 %v488, %v549
    %s554 = sld [smem:[#allocation7 + $0x380]]
    %v555 = vstv %s554
    %v556 = vmul.f32 %v555, %v530
    %v557 = vmul.f32 %v555, %v531
    %v558 = vmul.f32 %v555, %v532
    %v559 = vmul.f32 %v555, %v533
    %v560 = vadd.f32 %v495, %v556
    %v561 = vadd.f32 %v496, %v557
    %v562 = vadd.f32 %v497, %v558
    %v563 = vadd.f32 %v498, %v559
    %s564 = sld [smem:[#allocation7 + $0x381]]
    %v565 = vstv %s564
    %v566 = vmul.f32 %v565, %v530
    %v567 = vmul.f32 %v565, %v531
    %v568 = vmul.f32 %v565, %v532
    %v569 = vmul.f32 %v565, %v533
    %v570 = vadd.f32 %v505, %v566
    %v571 = vadd.f32 %v506, %v567
    %v572 = vadd.f32 %v507, %v568
    %v573 = vadd.f32 %v508, %v569
    %s574 = sld [smem:[#allocation9 + $0x380]]
    %v575 = vstv %s574
    %v576 = vmul.f32 %v575, %v530
    %v577 = vmul.f32 %v575, %v531
    %v578 = vmul.f32 %v575, %v532
    %v579 = vmul.f32 %v575, %v533
    %v580 = vadd.f32 %v515, %v576
    %v581 = vadd.f32 %v516, %v577
    %v582 = vadd.f32 %v517, %v578
    %v583 = vadd.f32 %v518, %v579
    %s584 = sld [smem:[#allocation9 + $0x381]]
    %v585 = vstv %s584
    %v586 = vmul.f32 %v585, %v530
    %v587 = vmul.f32 %v585, %v531
    %v588 = vmul.f32 %v585, %v532
    %v589 = vmul.f32 %v585, %v533
    %v590 = vadd.f32 %v525, %v586
    %v591 = vadd.f32 %v526, %v587
    %v592 = vadd.f32 %v527, %v588
    %v593 = vadd.f32 %v528, %v589
    %v594 = vld [vmem:[%s3] sm:$0xff]
    %v595 = vld [vmem:[%s3 + $0x8] sm:$0xff]
    %vm596 = vcmask 130048
    %v598 = vsel %vm596, %v95, 0
    %v601 = vsel %vm596, %v96, 0
    %v604 = vsel %vm596, %v97, 0
    %v607 = vsel %vm596, %v98, 0
    %609 = vmatprep.subr.mxu0 0.0
    %610 = vmatpush1.msra.mxu0 %v594
    %611 = vmatprep.subr.mxu0 0.0
    %612 = vmatpush1.msra.mxu0 %v595
    %613 = vmatprep.subr.mxu0 0.0
    %614 = vmatpush1.msra.mxu0 0.0
    %615 = vmatprep.subr.mxu0 0.0
    %616 = vmatpush1.msra.mxu0 0.0
    %617 = vmatprep.subr.mxu0 0.0
    %618 = vmatpush1.msra.mxu0 0.0
    %619 = vmatprep.subr.mxu0 0.0
    %620 = vmatpush1.msra.mxu0 0.0
    %621 = vmatprep.subr.mxu0 0.0
    %622 = vmatpush1.msra.mxu0 0.0
    %623 = vmatprep.subr.mxu0 0.0
    %624 = vmatpush1.msra.mxu0 0.0
    %625 = vmatprep.subr.mxu0 0.0
    %626 = vmatpush1.msra.mxu0 0.0
    %627 = vmatprep.subr.mxu0 0.0
    %628 = vmatpush1.msra.mxu0 0.0
    %629 = vmatprep.subr.mxu0 0.0
    %630 = vmatpush1.msra.mxu0 0.0
    %631 = vmatprep.subr.mxu0 0.0
    %632 = vmatpush1.msra.mxu0 0.0
    %633 = vmatprep.subr.mxu0 0.0
    %634 = vmatpush1.msra.mxu0 0.0
    %635 = vmatprep.subr.mxu0 0.0
    %636 = vmatpush1.msra.mxu0 0.0
    %637 = vmatprep.subr.mxu0 0.0
    %638 = vmatpush1.msra.mxu0 0.0
    %639 = vmatprep.subr.mxu0 0.0
    %640 = vmatpush1.msra.mxu0 0.0
    %641 = vmatprep.subr.mxu0 0.0
    %642 = vmatpush1.msra.mxu0 0.0
    %643 = vmatprep.subr.mxu0 0.0
    %644 = vmatpush1.msra.mxu0 0.0
    %645 = vmatprep.subr.mxu0 0.0
    %646 = vmatpush1.msra.mxu0 0.0
    %647 = vmatprep.subr.mxu0 0.0
    %648 = vmatpush1.msra.mxu0 0.0
    %649 = vmatprep.subr.mxu0 0.0
    %650 = vmatpush1.msra.mxu0 0.0
    %651 = vmatprep.subr.mxu0 0.0
    %652 = vmatpush1.msra.mxu0 0.0
    %653 = vmatprep.subr.mxu0 0.0
    %654 = vmatpush1.msra.mxu0 0.0
    %655 = vmatprep.subr.mxu0 0.0
    %656 = vmatpush1.msra.mxu0 0.0
    %657 = vmatprep.subr.mxu0 0.0
    %658 = vmatpush1.msra.mxu0 0.0
    %659 = vmatprep.subr.mxu0 0.0
    %660 = vmatpush1.msra.mxu0 0.0
    %661 = vmatprep.subr.mxu0 0.0
    %662 = vmatpush1.msra.mxu0 0.0
    %663 = vmatprep.subr.mxu0 0.0
    %664 = vmatpush1.msra.mxu0 0.0
    %665 = vmatprep.subr.mxu0 0.0
    %666 = vmatpush1.msra.mxu0 0.0
    %667 = vmatprep.subr.mxu0 0.0
    %668 = vmatpush1.msra.mxu0 0.0
    %669 = vmatprep.subr.mxu0 0.0
    %670 = vmatpush1.msra.mxu0 0.0
    %671 = vmatprep.subr.mxu0 0.0
    %672 = vmatpush1.msra.mxu0 0.0
    %673 = vmatprep.mubr.f32.mxu0 0.0
    %674 = vmatmul.mubr.f32.gmra.mrb[0].mxu0 %v598
    %v675 = vpop.f32.mrb[0].mxu0
    %v676 = vadd.f32 0.0, %v675
    %v677 = vpop.f32.mrb[0].mxu0
    %678 = vmatprep.mubr.f32.mxu0 0.0
    %679 = vmatmul.mubr.f32.gmra.mrb[0].mxu0 %v601
    %v680 = vpop.f32.mrb[0].mxu0
    %v681 = vadd.f32 0.0, %v680
    %v682 = vpop.f32.mrb[0].mxu0
    %683 = vmatprep.mubr.f32.mxu0 0.0
    %684 = vmatmul.mubr.f32.gmra.mrb[0].mxu0 %v604
    %v685 = vpop.f32.mrb[0].mxu0
    %v686 = vadd.f32 0.0, %v685
    %v687 = vpop.f32.mrb[0].mxu0
    %688 = vmatprep.mubr.f32.mxu0 0.0
    %689 = vmatmul.mubr.f32.gmra.mrb[0].mxu0 %v607
    %v690 = vpop.f32.mrb[0].mxu0
    %v691 = vadd.f32 0.0, %v690
    %v692 = vpop.f32.mrb[0].mxu0
    %693 = vdwg.mxu0
    %v694 = vld [vmem:[%s4] sm:$0x3]
    %v696 = vsel %vm596, %v694, 0
    %698 = vmatprep.subr.mxu0 0.0
    %699 = vmatpush1.xpose.msra.mxu0 %v598
    %700 = vmatprep.subr.mxu0 0.0
    %701 = vmatpush1.xpose.msra.mxu0 %v601
    %702 = vmatprep.subr.mxu0 0.0
    %703 = vmatpush1.xpose.msra.mxu0 %v604
    %704 = vmatprep.subr.mxu0 0.0
    %705 = vmatpush1.xpose.msra.mxu0 %v607
    %706 = vmatprep.subr.mxu0 0.0
    %707 = vmatpush1.xpose.msra.mxu0 0.0
    %708 = vmatprep.subr.mxu0 0.0
    %709 = vmatpush1.xpose.msra.mxu0 0.0
    %710 = vmatprep.subr.mxu0 0.0
    %711 = vmatpush1.xpose.msra.mxu0 0.0
    %712 = vmatprep.subr.mxu0 0.0
    %713 = vmatpush1.xpose.msra.mxu0 0.0
    %714 = vmatprep.subr.mxu0 0.0
    %715 = vmatpush1.xpose.msra.mxu0 0.0
    %716 = vmatprep.subr.mxu0 0.0
    %717 = vmatpush1.xpose.msra.mxu0 0.0
    %718 = vmatprep.subr.mxu0 0.0
    %719 = vmatpush1.xpose.msra.mxu0 0.0
    %720 = vmatprep.subr.mxu0 0.0
    %721 = vmatpush1.xpose.msra.mxu0 0.0
    %722 = vmatprep.subr.mxu0 0.0
    %723 = vmatpush1.xpose.msra.mxu0 0.0
    %724 = vmatprep.subr.mxu0 0.0
    %725 = vmatpush1.xpose.msra.mxu0 0.0
    %726 = vmatprep.subr.mxu0 0.0
    %727 = vmatpush1.xpose.msra.mxu0 0.0
    %728 = vmatprep.subr.mxu0 0.0
    %729 = vmatpush1.xpose.msra.mxu0 0.0
    %730 = vmatprep.subr.mxu0 0.0
    %731 = vmatpush1.xpose.msra.mxu0 0.0
    %732 = vmatprep.subr.mxu0 0.0
    %733 = vmatpush1.xpose.msra.mxu0 0.0
    %734 = vmatprep.subr.mxu0 0.0
    %735 = vmatpush1.xpose.msra.mxu0 0.0
    %736 = vmatprep.subr.mxu0 0.0
    %737 = vmatpush1.xpose.msra.mxu0 0.0
    %738 = vmatprep.subr.mxu0 0.0
    %739 = vmatpush1.xpose.msra.mxu0 0.0
    %740 = vmatprep.subr.mxu0 0.0
    %741 = vmatpush1.xpose.msra.mxu0 0.0
    %742 = vmatprep.subr.mxu0 0.0
    %743 = vmatpush1.xpose.msra.mxu0 0.0
    %744 = vmatprep.subr.mxu0 0.0
    %745 = vmatpush1.xpose.msra.mxu0 0.0
    %746 = vmatprep.subr.mxu0 0.0
    %747 = vmatpush1.xpose.msra.mxu0 0.0
    %748 = vmatprep.subr.mxu0 0.0
    %749 = vmatpush1.xpose.msra.mxu0 0.0
    %750 = vmatprep.subr.mxu0 0.0
    %751 = vmatpush1.xpose.msra.mxu0 0.0
    %752 = vmatprep.subr.mxu0 0.0
    %753 = vmatpush1.xpose.msra.mxu0 0.0
    %754 = vmatprep.subr.mxu0 0.0
    %755 = vmatpush1.xpose.msra.mxu0 0.0
    %756 = vmatprep.subr.mxu0 0.0
    %757 = vmatpush1.xpose.msra.mxu0 0.0
    %758 = vmatprep.subr.mxu0 0.0
    %759 = vmatpush1.xpose.msra.mxu0 0.0
    %760 = vmatprep.subr.mxu0 0.0
    %761 = vmatpush1.xpose.msra.mxu0 0.0
    %762 = vmatprep.mubr.f32.mxu0 0.0
    %763 = vmatmul.mubr.f32.gmra.mrb[0].mxu0 %v696
    %v764 = vpop.f32.mrb[0].mxu0
    %v765 = vadd.f32 0.0, %v764
    %v766 = vpop.f32.mrb[0].mxu0
    %767 = vdwg.mxu0
    %769 = vset.pattern.permute.xlu0 32
    %770 = vperm.xlu0 %769, %v676
    %v771 = vpop.permute.xlu0 %770
    %774 = vset.pattern.permute.xlu0 32
    %775 = vperm.xlu0 %774, %v681
    %v776 = vpop.permute.xlu0 %775
    %779 = vset.pattern.permute.xlu0 32
    %780 = vperm.xlu0 %779, %v686
    %v781 = vpop.permute.xlu0 %780
    %784 = vset.pattern.permute.xlu0 32
    %785 = vperm.xlu0 %784, %v691
    %v786 = vpop.permute.xlu0 %785
    %v788 = vlaneseq
    %v789 = vshrl.u32 %v788, 7
    %v790 = vsub.s32 0, %v789
    %v791 = vrot.slane %v765, %v790
    %v792 = vadd.f32 %v771, %v791
    %v793 = vadd.f32 %v776, %v791
    %v794 = vadd.f32 %v781, %v791
    %v795 = vadd.f32 %v786, %v791
    %v796 = vadd.f32 %v792, %v540
    %v797 = vadd.f32 %v793, %v541
    %v798 = vadd.f32 %v794, %v542
    %v799 = vadd.f32 %v795, %v543
    %v800 = vmul.f32 %v796, 0.2
    %v801 = vmul.f32 %v797, 0.2
    %v802 = vmul.f32 %v798, 0.2
    %v803 = vmul.f32 %v799, 0.2
    %v804 = vmax.f32 %v796, %v800
    %v805 = vmax.f32 %v797, %v801
    %v806 = vmax.f32 %v798, %v802
    %v807 = vmax.f32 %v799, %v803
    %v808 = vadd.f32 %v804, %v91
    %v809 = vadd.f32 %v805, %v92
    %v810 = vadd.f32 %v806, %v93
    %v811 = vadd.f32 %v807, %v94
    %vm812 = vcmask 261120
    %v813 = vsel %vm812, %v808, -inf
    %814 = vmax.xlane.f32.xlu0 %v813
    %v815 = vpop.xlane.xlu0 %814
    %v816 = vsel %vm812, %v809, -inf
    %817 = vmax.xlane.f32.xlu0 %v816
    %v818 = vpop.xlane.xlu0 %817
    %v819 = vsel %vm812, %v810, -inf
    %820 = vmax.xlane.f32.xlu0 %v819
    %v821 = vpop.xlane.xlu0 %820
    %v822 = vsel %vm812, %v811, -inf
    %823 = vmax.xlane.f32.xlu0 %v822
    %v824 = vpop.xlane.xlu0 %823
    %v825 = vsub.f32 %v808, %v815
    %v826 = vsub.f32 %v809, %v818
    %v827 = vsub.f32 %v810, %v821
    %v828 = vsub.f32 %v811, %v824
    %v829 = vmul.f32 %v825, 1.442695
    %v830 = vpow.pop %v829
    %v831 = vmul.f32 %v826, 1.442695
    %v832 = vpow.pop %v831
    %v833 = vmul.f32 %v827, 1.442695
    %v834 = vpow.pop %v833
    %v835 = vmul.f32 %v828, 1.442695
    %v836 = vpow.pop %v835
    %v837 = vsel %vm812, %v830, 0.0
    %838 = vadd.xlane.f32.xlu0 %v837
    %v839 = vpop.xlane.xlu0 %838
    %v840 = vsel %vm812, %v832, 0.0
    %841 = vadd.xlane.f32.xlu0 %v840
    %v842 = vpop.xlane.xlu0 %841
    %v843 = vsel %vm812, %v834, 0.0
    %844 = vadd.xlane.f32.xlu0 %v843
    %v845 = vpop.xlane.xlu0 %844
    %v846 = vsel %vm812, %v836, 0.0
    %847 = vadd.xlane.f32.xlu0 %v846
    %v848 = vpop.xlane.xlu0 %847
    %v849 = vrcp.pop %v839
    %v850 = vrcp.pop %v842
    %v851 = vrcp.pop %v845
    %v852 = vrcp.pop %v848
    %v854 = vsel %vm812, %v830, 0
    %v857 = vsel %vm812, %v832, 0
    %v860 = vsel %vm812, %v834, 0
    %v863 = vsel %vm812, %v836, 0
    %865 = vmatprep.subr.mxu0 0.0
    %866 = vmatpush1.msra.mxu0 %v676
    %867 = vmatprep.subr.mxu0 0.0
    %868 = vmatpush1.msra.mxu0 %v681
    %869 = vmatprep.subr.mxu0 0.0
    %870 = vmatpush1.msra.mxu0 %v686
    %871 = vmatprep.subr.mxu0 0.0
    %872 = vmatpush1.msra.mxu0 %v691
    %873 = vmatprep.subr.mxu0 0.0
    %874 = vmatpush1.msra.mxu0 0.0
    %875 = vmatprep.subr.mxu0 0.0
    %876 = vmatpush1.msra.mxu0 0.0
    %877 = vmatprep.subr.mxu0 0.0
    %878 = vmatpush1.msra.mxu0 0.0
    %879 = vmatprep.subr.mxu0 0.0
    %880 = vmatpush1.msra.mxu0 0.0
    %881 = vmatprep.subr.mxu0 0.0
    %882 = vmatpush1.msra.mxu0 0.0
    %883 = vmatprep.subr.mxu0 0.0
    %884 = vmatpush1.msra.mxu0 0.0
    %885 = vmatprep.subr.mxu0 0.0
    %886 = vmatpush1.msra.mxu0 0.0
    %887 = vmatprep.subr.mxu0 0.0
    %888 = vmatpush1.msra.mxu0 0.0
    %889 = vmatprep.subr.mxu0 0.0
    %890 = vmatpush1.msra.mxu0 0.0
    %891 = vmatprep.subr.mxu0 0.0
    %892 = vmatpush1.msra.mxu0 0.0
    %893 = vmatprep.subr.mxu0 0.0
    %894 = vmatpush1.msra.mxu0 0.0
    %895 = vmatprep.subr.mxu0 0.0
    %896 = vmatpush1.msra.mxu0 0.0
    %897 = vmatprep.subr.mxu0 0.0
    %898 = vmatpush1.msra.mxu0 0.0
    %899 = vmatprep.subr.mxu0 0.0
    %900 = vmatpush1.msra.mxu0 0.0
    %901 = vmatprep.subr.mxu0 0.0
    %902 = vmatpush1.msra.mxu0 0.0
    %903 = vmatprep.subr.mxu0 0.0
    %904 = vmatpush1.msra.mxu0 0.0
    %905 = vmatprep.subr.mxu0 0.0
    %906 = vmatpush1.msra.mxu0 0.0
    %907 = vmatprep.subr.mxu0 0.0
    %908 = vmatpush1.msra.mxu0 0.0
    %909 = vmatprep.subr.mxu0 0.0
    %910 = vmatpush1.msra.mxu0 0.0
    %911 = vmatprep.subr.mxu0 0.0
    %912 = vmatpush1.msra.mxu0 0.0
    %913 = vmatprep.subr.mxu0 0.0
    %914 = vmatpush1.msra.mxu0 0.0
    %915 = vmatprep.subr.mxu0 0.0
    %916 = vmatpush1.msra.mxu0 0.0
    %917 = vmatprep.subr.mxu0 0.0
    %918 = vmatpush1.msra.mxu0 0.0
    %919 = vmatprep.subr.mxu0 0.0
    %920 = vmatpush1.msra.mxu0 0.0
    %921 = vmatprep.subr.mxu0 0.0
    %922 = vmatpush1.msra.mxu0 0.0
    %923 = vmatprep.subr.mxu0 0.0
    %924 = vmatpush1.msra.mxu0 0.0
    %925 = vmatprep.subr.mxu0 0.0
    %926 = vmatpush1.msra.mxu0 0.0
    %927 = vmatprep.subr.mxu0 0.0
    %928 = vmatpush1.msra.mxu0 0.0
    %929 = vmatprep.mubr.f32.mxu0 0.0
    %930 = vmatmul.mubr.f32.gmra.mrb[0].mxu0 %v854
    %v931 = vpop.f32.mrb[0].mxu0
    %v932 = vadd.f32 0.0, %v931
    %v933 = vpop.f32.mrb[0].mxu0
    %934 = vmatprep.mubr.f32.mxu0 0.0
    %935 = vmatmul.mubr.f32.gmra.mrb[0].mxu0 %v857
    %v936 = vpop.f32.mrb[0].mxu0
    %v937 = vadd.f32 0.0, %v936
    %v938 = vpop.f32.mrb[0].mxu0
    %939 = vmatprep.mubr.f32.mxu0 0.0
    %940 = vmatmul.mubr.f32.gmra.mrb[0].mxu0 %v860
    %v941 = vpop.f32.mrb[0].mxu0
    %v942 = vadd.f32 0.0, %v941
    %v943 = vpop.f32.mrb[0].mxu0
    %944 = vmatprep.mubr.f32.mxu0 0.0
    %945 = vmatmul.mubr.f32.gmra.mrb[0].mxu0 %v863
    %v946 = vpop.f32.mrb[0].mxu0
    %v947 = vadd.f32 0.0, %v946
    %v948 = vpop.f32.mrb[0].mxu0
    %949 = vdwg.mxu0
    %v950 = vmul.f32 %v932, %v849
    %v951 = vmul.f32 %v937, %v850
    %v952 = vmul.f32 %v942, %v851
    %v953 = vmul.f32 %v947, %v852
    %954 = vst.msk [vmem:[#allocation2] sm:$0xff] %vm596, %v950
    %955 = vst.msk [vmem:[#allocation2 + $0x8] sm:$0xff] %vm596, %v951
    %956 = vst.msk [vmem:[#allocation2 + $0x10] sm:$0xff] %vm596, %v952
    %957 = vst.msk [vmem:[#allocation2 + $0x18] sm:$0xff] %vm596, %v953
    %958 = vset.pattern.permute.xlu0 33
    %959 = vperm.xlu0 %958, %v676
    %v960 = vpop.permute.xlu0 %959
    %962 = vset.pattern.permute.xlu0 33
    %963 = vperm.xlu0 %962, %v681
    %v964 = vpop.permute.xlu0 %963
    %966 = vset.pattern.permute.xlu0 33
    %967 = vperm.xlu0 %966, %v686
    %v968 = vpop.permute.xlu0 %967
    %970 = vset.pattern.permute.xlu0 33
    %971 = vperm.xlu0 %970, %v691
    %v972 = vpop.permute.xlu0 %971
    %v974 = vlaneseq
    %v975 = vshrl.u32 %v974, 7
    %v976 = vsub.s32 1, %v975
    %v977 = vrot.slane %v765, %v976
    %v978 = vadd.f32 %v960, %v977
    %v979 = vadd.f32 %v964, %v977
    %v980 = vadd.f32 %v968, %v977
    %v981 = vadd.f32 %v972, %v977
    %v982 = vadd.f32 %v978, %v550
    %v983 = vadd.f32 %v979, %v551
    %v984 = vadd.f32 %v980, %v552
    %v985 = vadd.f32 %v981, %v553
    %v986 = vmul.f32 %v982, 0.2
    %v987 = vmul.f32 %v983, 0.2
    %v988 = vmul.f32 %v984, 0.2
    %v989 = vmul.f32 %v985, 0.2
    %v990 = vmax.f32 %v982, %v986
    %v991 = vmax.f32 %v983, %v987
    %v992 = vmax.f32 %v984, %v988
    %v993 = vmax.f32 %v985, %v989
    %v994 = vadd.f32 %v990, %v91
    %v995 = vadd.f32 %v991, %v92
    %v996 = vadd.f32 %v992, %v93
    %v997 = vadd.f32 %v993, %v94
    %v998 = vsel %vm812, %v994, -inf
    %999 = vmax.xlane.f32.xlu0 %v998
    %v1000 = vpop.xlane.xlu0 %999
    %v1001 = vsel %vm812, %v995, -inf
    %1002 = vmax.xlane.f32.xlu0 %v1001
    %v1003 = vpop.xlane.xlu0 %1002
    %v1004 = vsel %vm812, %v996, -inf
    %1005 = vmax.xlane.f32.xlu0 %v1004
    %v1006 = vpop.xlane.xlu0 %1005
    %v1007 = vsel %vm812, %v997, -inf
    %1008 = vmax.xlane.f32.xlu0 %v1007
    %v1009 = vpop.xlane.xlu0 %1008
    %v1010 = vsub.f32 %v994, %v1000
    %v1011 = vsub.f32 %v995, %v1003
    %v1012 = vsub.f32 %v996, %v1006
    %v1013 = vsub.f32 %v997, %v1009
    %v1014 = vmul.f32 %v1010, 1.442695
    %v1015 = vpow.pop %v1014
    %v1016 = vmul.f32 %v1011, 1.442695
    %v1017 = vpow.pop %v1016
    %v1018 = vmul.f32 %v1012, 1.442695
    %v1019 = vpow.pop %v1018
    %v1020 = vmul.f32 %v1013, 1.442695
    %v1021 = vpow.pop %v1020
    %v1022 = vsel %vm812, %v1015, 0.0
    %1023 = vadd.xlane.f32.xlu0 %v1022
    %v1024 = vpop.xlane.xlu0 %1023
    %v1025 = vsel %vm812, %v1017, 0.0
    %1026 = vadd.xlane.f32.xlu0 %v1025
    %v1027 = vpop.xlane.xlu0 %1026
    %v1028 = vsel %vm812, %v1019, 0.0
    %1029 = vadd.xlane.f32.xlu0 %v1028
    %v1030 = vpop.xlane.xlu0 %1029
    %v1031 = vsel %vm812, %v1021, 0.0
    %1032 = vadd.xlane.f32.xlu0 %v1031
    %v1033 = vpop.xlane.xlu0 %1032
    %v1034 = vrcp.pop %v1024
    %v1035 = vrcp.pop %v1027
    %v1036 = vrcp.pop %v1030
    %v1037 = vrcp.pop %v1033
    %1038 = vrot.lane.b32.xlu0 %v676, 112
    %v1039 = vpop.permute.xlu0 %1038
    %1040 = vrot.lane.b32.xlu0 %v681, 112
    %v1041 = vpop.permute.xlu0 %1040
    %1042 = vrot.lane.b32.xlu0 %v686, 112
    %v1043 = vpop.permute.xlu0 %1042
    %1044 = vrot.lane.b32.xlu0 %v691, 112
    %v1045 = vpop.permute.xlu0 %1044
    %v1051 = vsel %vm812, %v1015, 0
    %v1054 = vsel %vm812, %v1017, 0
    %v1057 = vsel %vm812, %v1019, 0
    %v1060 = vsel %vm812, %v1021, 0
    %1062 = vmatprep.subr.mxu0 0.0
    %1063 = vmatpush1.msra.mxu0 %v1039
    %1064 = vmatprep.subr.mxu0 0.0
    %1065 = vmatpush1.msra.mxu0 %v1041
    %1066 = vmatprep.subr.mxu0 0.0
    %1067 = vmatpush1.msra.mxu0 %v1043
    %1068 = vmatprep.subr.mxu0 0.0
    %1069 = vmatpush1.msra.mxu0 %v1045
    %1070 = vmatprep.subr.mxu0 0.0
    %1071 = vmatpush1.msra.mxu0 0.0
    %1072 = vmatprep.subr.mxu0 0.0
    %1073 = vmatpush1.msra.mxu0 0.0
    %1074 = vmatprep.subr.mxu0 0.0
    %1075 = vmatpush1.msra.mxu0 0.0
    %1076 = vmatprep.subr.mxu0 0.0
    %1077 = vmatpush1.msra.mxu0 0.0
    %1078 = vmatprep.subr.mxu0 0.0
    %1079 = vmatpush1.msra.mxu0 0.0
    %1080 = vmatprep.subr.mxu0 0.0
    %1081 = vmatpush1.msra.mxu0 0.0
    %1082 = vmatprep.subr.mxu0 0.0
    %1083 = vmatpush1.msra.mxu0 0.0
    %1084 = vmatprep.subr.mxu0 0.0
    %1085 = vmatpush1.msra.mxu0 0.0
    %1086 = vmatprep.subr.mxu0 0.0
    %1087 = vmatpush1.msra.mxu0 0.0
    %1088 = vmatprep.subr.mxu0 0.0
    %1089 = vmatpush1.msra.mxu0 0.0
    %1090 = vmatprep.subr.mxu0 0.0
    %1091 = vmatpush1.msra.mxu0 0.0
    %1092 = vmatprep.subr.mxu0 0.0
    %1093 = vmatpush1.msra.mxu0 0.0
    %1094 = vmatprep.subr.mxu0 0.0
    %1095 = vmatpush1.msra.mxu0 0.0
    %1096 = vmatprep.subr.mxu0 0.0
    %1097 = vmatpush1.msra.mxu0 0.0
    %1098 = vmatprep.subr.mxu0 0.0
    %1099 = vmatpush1.msra.mxu0 0.0
    %1100 = vmatprep.subr.mxu0 0.0
    %1101 = vmatpush1.msra.mxu0 0.0
    %1102 = vmatprep.subr.mxu0 0.0
    %1103 = vmatpush1.msra.mxu0 0.0
    %1104 = vmatprep.subr.mxu0 0.0
    %1105 = vmatpush1.msra.mxu0 0.0
    %1106 = vmatprep.subr.mxu0 0.0
    %1107 = vmatpush1.msra.mxu0 0.0
    %1108 = vmatprep.subr.mxu0 0.0
    %1109 = vmatpush1.msra.mxu0 0.0
    %1110 = vmatprep.subr.mxu0 0.0
    %1111 = vmatpush1.msra.mxu0 0.0
    %1112 = vmatprep.subr.mxu0 0.0
    %1113 = vmatpush1.msra.mxu0 0.0
    %1114 = vmatprep.subr.mxu0 0.0
    %1115 = vmatpush1.msra.mxu0 0.0
    %1116 = vmatprep.subr.mxu0 0.0
    %1117 = vmatpush1.msra.mxu0 0.0
    %1118 = vmatprep.subr.mxu0 0.0
    %1119 = vmatpush1.msra.mxu0 0.0
    %1120 = vmatprep.subr.mxu0 0.0
    %1121 = vmatpush1.msra.mxu0 0.0
    %1122 = vmatprep.subr.mxu0 0.0
    %1123 = vmatpush1.msra.mxu0 0.0
    %1124 = vmatprep.subr.mxu0 0.0
    %1125 = vmatpush1.msra.mxu0 0.0
    %1126 = vmatprep.mubr.f32.mxu0 0.0
    %1127 = vmatmul.mubr.f32.gmra.mrb[0].mxu0 %v1051
    %v1128 = vpop.f32.mrb[0].mxu0
    %v1129 = vadd.f32 0.0, %v1128
    %v1130 = vpop.f32.mrb[0].mxu0
    %1131 = vmatprep.mubr.f32.mxu0 0.0
    %1132 = vmatmul.mubr.f32.gmra.mrb[0].mxu0 %v1054
    %v1133 = vpop.f32.mrb[0].mxu0
    %v1134 = vadd.f32 0.0, %v1133
    %v1135 = vpop.f32.mrb[0].mxu0
    %1136 = vmatprep.mubr.f32.mxu0 0.0
    %1137 = vmatmul.mubr.f32.gmra.mrb[0].mxu0 %v1057
    %v1138 = vpop.f32.mrb[0].mxu0
    %v1139 = vadd.f32 0.0, %v1138
    %v1140 = vpop.f32.mrb[0].mxu0
    %1141 = vmatprep.mubr.f32.mxu0 0.0
    %1142 = vmatmul.mubr.f32.gmra.mrb[0].mxu0 %v1060
    %v1143 = vpop.f32.mrb[0].mxu0
    %v1144 = vadd.f32 0.0, %v1143
    %v1145 = vpop.f32.mrb[0].mxu0
    %1146 = vdwg.mxu0
    %v1147 = vmul.f32 %v1129, %v1034
    %v1148 = vmul.f32 %v1134, %v1035
    %v1149 = vmul.f32 %v1139, %v1036
    %v1150 = vmul.f32 %v1144, %v1037
    %1155 = vrot.lane.b32.xlu0 %v1147, 16
    %v1156 = vpop.permute.xlu0 %1155
    %1157 = vrot.lane.b32.xlu0 %v1148, 16
    %v1158 = vpop.permute.xlu0 %1157
    %1159 = vrot.lane.b32.xlu0 %v1149, 16
    %v1160 = vpop.permute.xlu0 %1159
    %1161 = vrot.lane.b32.xlu0 %v1150, 16
    %v1162 = vpop.permute.xlu0 %1161
    %vm1167 = vcmask 261248
    %1168 = vst.msk [vmem:[#allocation2] sm:$0xff] %vm1167, %v1156
    %1169 = vst.msk [vmem:[#allocation2 + $0x8] sm:$0xff] %vm1167, %v1158
    %1170 = vst.msk [vmem:[#allocation2 + $0x10] sm:$0xff] %vm1167, %v1160
    %1171 = vst.msk [vmem:[#allocation2 + $0x18] sm:$0xff] %vm1167, %v1162
    %v1172 = vld [vmem:[#allocation2] sm:$0xff]
    %v1173 = vld [vmem:[#allocation2 + $0x8] sm:$0xff]
    %v1174 = vld [vmem:[#allocation2 + $0x10] sm:$0xff]
    %v1175 = vld [vmem:[#allocation2 + $0x18] sm:$0xff]
    %vm1176 = vcmp.gt.f32.partialorder %v1172, 0.0
    %vm1177 = vcmp.gt.f32.partialorder %v1173, 0.0
    %vm1178 = vcmp.gt.f32.partialorder %v1174, 0.0
    %vm1179 = vcmp.gt.f32.partialorder %v1175, 0.0
    %v1180 = vmin.f32 %v1172, 0.0
    %v1181 = vmin.f32 %v1173, 0.0
    %v1182 = vmin.f32 %v1174, 0.0
    %v1183 = vmin.f32 %v1175, 0.0
    %v1184 = vmul.f32 %v1180, 1.442695
    %v1185 = vpow.pop %v1184
    %v1186 = vmul.f32 %v1181, 1.442695
    %v1187 = vpow.pop %v1186
    %v1188 = vmul.f32 %v1182, 1.442695
    %v1189 = vpow.pop %v1188
    %v1190 = vmul.f32 %v1183, 1.442695
    %v1191 = vpow.pop %v1190
    %v1192 = vsub.f32 %v1185, 1.0
    %v1193 = vsub.f32 %v1187, 1.0
    %v1194 = vsub.f32 %v1189, 1.0
    %v1195 = vsub.f32 %v1191, 1.0
    %v1196 = vsel %vm1176, %v1172, %v1192
    %v1197 = vsel %vm1177, %v1173, %v1193
    %v1198 = vsel %vm1178, %v1174, %v1194
    %v1199 = vsel %vm1179, %v1175, %v1195
    %v1200 = vld [vmem:[%s6] sm:$0xff]
    %v1201 = vld [vmem:[%s6 + $0x8] sm:$0xff]
    %v1202 = vld [vmem:[%s6 + $0x10] sm:$0xff]
    %v1203 = vld [vmem:[%s6 + $0x18] sm:$0xff]
    %v1205 = vsel %vm812, %v1196, 0
    %v1208 = vsel %vm812, %v1197, 0
    %v1211 = vsel %vm812, %v1198, 0
    %v1214 = vsel %vm812, %v1199, 0
    %1216 = vmatprep.subr.mxu0 0.0
    %1217 = vmatpush1.msra.mxu0 %v1200
    %1218 = vmatprep.subr.mxu0 0.0
    %1219 = vmatpush1.msra.mxu0 %v1201
    %1220 = vmatprep.subr.mxu0 0.0
    %1221 = vmatpush1.msra.mxu0 %v1202
    %1222 = vmatprep.subr.mxu0 0.0
    %1223 = vmatpush1.msra.mxu0 %v1203
    %1224 = vmatprep.subr.mxu0 0.0
    %1225 = vmatpush1.msra.mxu0 0.0
    %1226 = vmatprep.subr.mxu0 0.0
    %1227 = vmatpush1.msra.mxu0 0.0
    %1228 = vmatprep.subr.mxu0 0.0
    %1229 = vmatpush1.msra.mxu0 0.0
    %1230 = vmatprep.subr.mxu0 0.0
    %1231 = vmatpush1.msra.mxu0 0.0
    %1232 = vmatprep.subr.mxu0 0.0
    %1233 = vmatpush1.msra.mxu0 0.0
    %1234 = vmatprep.subr.mxu0 0.0
    %1235 = vmatpush1.msra.mxu0 0.0
    %1236 = vmatprep.subr.mxu0 0.0
    %1237 = vmatpush1.msra.mxu0 0.0
    %1238 = vmatprep.subr.mxu0 0.0
    %1239 = vmatpush1.msra.mxu0 0.0
    %1240 = vmatprep.subr.mxu0 0.0
    %1241 = vmatpush1.msra.mxu0 0.0
    %1242 = vmatprep.subr.mxu0 0.0
    %1243 = vmatpush1.msra.mxu0 0.0
    %1244 = vmatprep.subr.mxu0 0.0
    %1245 = vmatpush1.msra.mxu0 0.0
    %1246 = vmatprep.subr.mxu0 0.0
    %1247 = vmatpush1.msra.mxu0 0.0
    %1248 = vmatprep.subr.mxu0 0.0
    %1249 = vmatpush1.msra.mxu0 0.0
    %1250 = vmatprep.subr.mxu0 0.0
    %1251 = vmatpush1.msra.mxu0 0.0
    %1252 = vmatprep.subr.mxu0 0.0
    %1253 = vmatpush1.msra.mxu0 0.0
    %1254 = vmatprep.subr.mxu0 0.0
    %1255 = vmatpush1.msra.mxu0 0.0
    %1256 = vmatprep.subr.mxu0 0.0
    %1257 = vmatpush1.msra.mxu0 0.0
    %1258 = vmatprep.subr.mxu0 0.0
    %1259 = vmatpush1.msra.mxu0 0.0
    %1260 = vmatprep.subr.mxu0 0.0
    %1261 = vmatpush1.msra.mxu0 0.0
    %1262 = vmatprep.subr.mxu0 0.0
    %1263 = vmatpush1.msra.mxu0 0.0
    %1264 = vmatprep.subr.mxu0 0.0
    %1265 = vmatpush1.msra.mxu0 0.0
    %1266 = vmatprep.subr.mxu0 0.0
    %1267 = vmatpush1.msra.mxu0 0.0
    %1268 = vmatprep.subr.mxu0 0.0
    %1269 = vmatpush1.msra.mxu0 0.0
    %1270 = vmatprep.subr.mxu0 0.0
    %1271 = vmatpush1.msra.mxu0 0.0
    %1272 = vmatprep.subr.mxu0 0.0
    %1273 = vmatpush1.msra.mxu0 0.0
    %1274 = vmatprep.subr.mxu0 0.0
    %1275 = vmatpush1.msra.mxu0 0.0
    %1276 = vmatprep.subr.mxu0 0.0
    %1277 = vmatpush1.msra.mxu0 0.0
    %1278 = vmatprep.subr.mxu0 0.0
    %1279 = vmatpush1.msra.mxu0 0.0
    %1280 = vmatprep.mubr.f32.mxu0 0.0
    %1281 = vmatmul.mubr.f32.gmra.mrb[0].mxu0 %v1205
    %v1282 = vpop.f32.mrb[0].mxu0
    %v1283 = vadd.f32 0.0, %v1282
    %v1284 = vpop.f32.mrb[0].mxu0
    %1285 = vmatprep.mubr.f32.mxu0 0.0
    %1286 = vmatmul.mubr.f32.gmra.mrb[0].mxu0 %v1208
    %v1287 = vpop.f32.mrb[0].mxu0
    %v1288 = vadd.f32 0.0, %v1287
    %v1289 = vpop.f32.mrb[0].mxu0
    %1290 = vmatprep.mubr.f32.mxu0 0.0
    %1291 = vmatmul.mubr.f32.gmra.mrb[0].mxu0 %v1211
    %v1292 = vpop.f32.mrb[0].mxu0
    %v1293 = vadd.f32 0.0, %v1292
    %v1294 = vpop.f32.mrb[0].mxu0
    %1295 = vmatprep.mubr.f32.mxu0 0.0
    %1296 = vmatmul.mubr.f32.gmra.mrb[0].mxu0 %v1214
    %v1297 = vpop.f32.mrb[0].mxu0
    %v1298 = vadd.f32 0.0, %v1297
    %v1299 = vpop.f32.mrb[0].mxu0
    %1300 = vdwg.mxu0
    %v1301 = vld [vmem:[%s7] sm:$0x3]
    %v1303 = vsel %vm812, %v1301, 0
    %1305 = vmatprep.subr.mxu0 0.0
    %1306 = vmatpush1.xpose.msra.mxu0 %v1205
    %1307 = vmatprep.subr.mxu0 0.0
    %1308 = vmatpush1.xpose.msra.mxu0 %v1208
    %1309 = vmatprep.subr.mxu0 0.0
    %1310 = vmatpush1.xpose.msra.mxu0 %v1211
    %1311 = vmatprep.subr.mxu0 0.0
    %1312 = vmatpush1.xpose.msra.mxu0 %v1214
    %1313 = vmatprep.subr.mxu0 0.0
    %1314 = vmatpush1.xpose.msra.mxu0 0.0
    %1315 = vmatprep.subr.mxu0 0.0
    %1316 = vmatpush1.xpose.msra.mxu0 0.0
    %1317 = vmatprep.subr.mxu0 0.0
    %1318 = vmatpush1.xpose.msra.mxu0 0.0
    %1319 = vmatprep.subr.mxu0 0.0
    %1320 = vmatpush1.xpose.msra.mxu0 0.0
    %1321 = vmatprep.subr.mxu0 0.0
    %1322 = vmatpush1.xpose.msra.mxu0 0.0
    %1323 = vmatprep.subr.mxu0 0.0
    %1324 = vmatpush1.xpose.msra.mxu0 0.0
    %1325 = vmatprep.subr.mxu0 0.0
    %1326 = vmatpush1.xpose.msra.mxu0 0.0
    %1327 = vmatprep.subr.mxu0 0.0
    %1328 = vmatpush1.xpose.msra.mxu0 0.0
    %1329 = vmatprep.subr.mxu0 0.0
    %1330 = vmatpush1.xpose.msra.mxu0 0.0
    %1331 = vmatprep.subr.mxu0 0.0
    %1332 = vmatpush1.xpose.msra.mxu0 0.0
    %1333 = vmatprep.subr.mxu0 0.0
    %1334 = vmatpush1.xpose.msra.mxu0 0.0
    %1335 = vmatprep.subr.mxu0 0.0
    %1336 = vmatpush1.xpose.msra.mxu0 0.0
    %1337 = vmatprep.subr.mxu0 0.0
    %1338 = vmatpush1.xpose.msra.mxu0 0.0
    %1339 = vmatprep.subr.mxu0 0.0
    %1340 = vmatpush1.xpose.msra.mxu0 0.0
    %1341 = vmatprep.subr.mxu0 0.0
    %1342 = vmatpush1.xpose.msra.mxu0 0.0
    %1343 = vmatprep.subr.mxu0 0.0
    %1344 = vmatpush1.xpose.msra.mxu0 0.0
    %1345 = vmatprep.subr.mxu0 0.0
    %1346 = vmatpush1.xpose.msra.mxu0 0.0
    %1347 = vmatprep.subr.mxu0 0.0
    %1348 = vmatpush1.xpose.msra.mxu0 0.0
    %1349 = vmatprep.subr.mxu0 0.0
    %1350 = vmatpush1.xpose.msra.mxu0 0.0
    %1351 = vmatprep.subr.mxu0 0.0
    %1352 = vmatpush1.xpose.msra.mxu0 0.0
    %1353 = vmatprep.subr.mxu0 0.0
    %1354 = vmatpush1.xpose.msra.mxu0 0.0
    %1355 = vmatprep.subr.mxu0 0.0
    %1356 = vmatpush1.xpose.msra.mxu0 0.0
    %1357 = vmatprep.subr.mxu0 0.0
    %1358 = vmatpush1.xpose.msra.mxu0 0.0
    %1359 = vmatprep.subr.mxu0 0.0
    %1360 = vmatpush1.xpose.msra.mxu0 0.0
    %1361 = vmatprep.subr.mxu0 0.0
    %1362 = vmatpush1.xpose.msra.mxu0 0.0
    %1363 = vmatprep.subr.mxu0 0.0
    %1364 = vmatpush1.xpose.msra.mxu0 0.0
    %1365 = vmatprep.subr.mxu0 0.0
    %1366 = vmatpush1.xpose.msra.mxu0 0.0
    %1367 = vmatprep.subr.mxu0 0.0
    %1368 = vmatpush1.xpose.msra.mxu0 0.0
    %1369 = vmatprep.mubr.f32.mxu0 0.0
    %1370 = vmatmul.mubr.f32.gmra.mrb[0].mxu0 %v1303
    %v1371 = vpop.f32.mrb[0].mxu0
    %v1372 = vadd.f32 0.0, %v1371
    %v1373 = vpop.f32.mrb[0].mxu0
    %1374 = vdwg.mxu0
    %1376 = vset.pattern.permute.xlu0 64
    %1377 = vperm.xlu0 %1376, %v1283
    %v1378 = vpop.permute.xlu0 %1377
    %1381 = vset.pattern.permute.xlu0 64
    %1382 = vperm.xlu0 %1381, %v1288
    %v1383 = vpop.permute.xlu0 %1382
    %1386 = vset.pattern.permute.xlu0 64
    %1387 = vperm.xlu0 %1386, %v1293
    %v1388 = vpop.permute.xlu0 %1387
    %1391 = vset.pattern.permute.xlu0 64
    %1392 = vperm.xlu0 %1391, %v1298
    %v1393 = vpop.permute.xlu0 %1392
    %v1395 = vlaneseq
    %v1396 = vshrl.u32 %v1395, 7
    %v1397 = vsub.s32 0, %v1396
    %v1398 = vrot.slane %v1372, %v1397
    %v1399 = vadd.f32 %v1378, %v1398
    %v1400 = vadd.f32 %v1383, %v1398
    %v1401 = vadd.f32 %v1388, %v1398
    %v1402 = vadd.f32 %v1393, %v1398
    %v1403 = vadd.f32 %v1399, %v560
    %v1404 = vadd.f32 %v1400, %v561
    %v1405 = vadd.f32 %v1401, %v562
    %v1406 = vadd.f32 %v1402, %v563
    %v1407 = vmul.f32 %v1403, 0.2
    %v1408 = vmul.f32 %v1404, 0.2
    %v1409 = vmul.f32 %v1405, 0.2
    %v1410 = vmul.f32 %v1406, 0.2
    %v1411 = vmax.f32 %v1403, %v1407
    %v1412 = vmax.f32 %v1404, %v1408
    %v1413 = vmax.f32 %v1405, %v1409
    %v1414 = vmax.f32 %v1406, %v1410
    %v1415 = vadd.f32 %v1411, %v91
    %v1416 = vadd.f32 %v1412, %v92
    %v1417 = vadd.f32 %v1413, %v93
    %v1418 = vadd.f32 %v1414, %v94
    %v1419 = vsel %vm812, %v1415, -inf
    %1420 = vmax.xlane.f32.xlu0 %v1419
    %v1421 = vpop.xlane.xlu0 %1420
    %v1422 = vsel %vm812, %v1416, -inf
    %1423 = vmax.xlane.f32.xlu0 %v1422
    %v1424 = vpop.xlane.xlu0 %1423
    %v1425 = vsel %vm812, %v1417, -inf
    %1426 = vmax.xlane.f32.xlu0 %v1425
    %v1427 = vpop.xlane.xlu0 %1426
    %v1428 = vsel %vm812, %v1418, -inf
    %1429 = vmax.xlane.f32.xlu0 %v1428
    %v1430 = vpop.xlane.xlu0 %1429
    %v1431 = vsub.f32 %v1415, %v1421
    %v1432 = vsub.f32 %v1416, %v1424
    %v1433 = vsub.f32 %v1417, %v1427
    %v1434 = vsub.f32 %v1418, %v1430
    %v1435 = vmul.f32 %v1431, 1.442695
    %v1436 = vpow.pop %v1435
    %v1437 = vmul.f32 %v1432, 1.442695
    %v1438 = vpow.pop %v1437
    %v1439 = vmul.f32 %v1433, 1.442695
    %v1440 = vpow.pop %v1439
    %v1441 = vmul.f32 %v1434, 1.442695
    %v1442 = vpow.pop %v1441
    %v1443 = vsel %vm812, %v1436, 0.0
    %1444 = vadd.xlane.f32.xlu0 %v1443
    %v1445 = vpop.xlane.xlu0 %1444
    %v1446 = vsel %vm812, %v1438, 0.0
    %1447 = vadd.xlane.f32.xlu0 %v1446
    %v1448 = vpop.xlane.xlu0 %1447
    %v1449 = vsel %vm812, %v1440, 0.0
    %1450 = vadd.xlane.f32.xlu0 %v1449
    %v1451 = vpop.xlane.xlu0 %1450
    %v1452 = vsel %vm812, %v1442, 0.0
    %1453 = vadd.xlane.f32.xlu0 %v1452
    %v1454 = vpop.xlane.xlu0 %1453
    %v1455 = vrcp.pop %v1445
    %v1456 = vrcp.pop %v1448
    %v1457 = vrcp.pop %v1451
    %v1458 = vrcp.pop %v1454
    %v1460 = vsel %vm812, %v1436, 0
    %v1463 = vsel %vm812, %v1438, 0
    %v1466 = vsel %vm812, %v1440, 0
    %v1469 = vsel %vm812, %v1442, 0
    %1471 = vmatprep.subr.mxu0 0.0
    %1472 = vmatpush1.msra.mxu0 %v1283
    %1473 = vmatprep.subr.mxu0 0.0
    %1474 = vmatpush1.msra.mxu0 %v1288
    %1475 = vmatprep.subr.mxu0 0.0
    %1476 = vmatpush1.msra.mxu0 %v1293
    %1477 = vmatprep.subr.mxu0 0.0
    %1478 = vmatpush1.msra.mxu0 %v1298
    %1479 = vmatprep.subr.mxu0 0.0
    %1480 = vmatpush1.msra.mxu0 0.0
    %1481 = vmatprep.subr.mxu0 0.0
    %1482 = vmatpush1.msra.mxu0 0.0
    %1483 = vmatprep.subr.mxu0 0.0
    %1484 = vmatpush1.msra.mxu0 0.0
    %1485 = vmatprep.subr.mxu0 0.0
    %1486 = vmatpush1.msra.mxu0 0.0
    %1487 = vmatprep.subr.mxu0 0.0
    %1488 = vmatpush1.msra.mxu0 0.0
    %1489 = vmatprep.subr.mxu0 0.0
    %1490 = vmatpush1.msra.mxu0 0.0
    %1491 = vmatprep.subr.mxu0 0.0
    %1492 = vmatpush1.msra.mxu0 0.0
    %1493 = vmatprep.subr.mxu0 0.0
    %1494 = vmatpush1.msra.mxu0 0.0
    %1495 = vmatprep.subr.mxu0 0.0
    %1496 = vmatpush1.msra.mxu0 0.0
    %1497 = vmatprep.subr.mxu0 0.0
    %1498 = vmatpush1.msra.mxu0 0.0
    %1499 = vmatprep.subr.mxu0 0.0
    %1500 = vmatpush1.msra.mxu0 0.0
    %1501 = vmatprep.subr.mxu0 0.0
    %1502 = vmatpush1.msra.mxu0 0.0
    %1503 = vmatprep.subr.mxu0 0.0
    %1504 = vmatpush1.msra.mxu0 0.0
    %1505 = vmatprep.subr.mxu0 0.0
    %1506 = vmatpush1.msra.mxu0 0.0
    %1507 = vmatprep.subr.mxu0 0.0
    %1508 = vmatpush1.msra.mxu0 0.0
    %1509 = vmatprep.subr.mxu0 0.0
    %1510 = vmatpush1.msra.mxu0 0.0
    %1511 = vmatprep.subr.mxu0 0.0
    %1512 = vmatpush1.msra.mxu0 0.0
    %1513 = vmatprep.subr.mxu0 0.0
    %1514 = vmatpush1.msra.mxu0 0.0
    %1515 = vmatprep.subr.mxu0 0.0
    %1516 = vmatpush1.msra.mxu0 0.0
    %1517 = vmatprep.subr.mxu0 0.0
    %1518 = vmatpush1.msra.mxu0 0.0
    %1519 = vmatprep.subr.mxu0 0.0
    %1520 = vmatpush1.msra.mxu0 0.0
    %1521 = vmatprep.subr.mxu0 0.0
    %1522 = vmatpush1.msra.mxu0 0.0
    %1523 = vmatprep.subr.mxu0 0.0
    %1524 = vmatpush1.msra.mxu0 0.0
    %1525 = vmatprep.subr.mxu0 0.0
    %1526 = vmatpush1.msra.mxu0 0.0
    %1527 = vmatprep.subr.mxu0 0.0
    %1528 = vmatpush1.msra.mxu0 0.0
    %1529 = vmatprep.subr.mxu0 0.0
    %1530 = vmatpush1.msra.mxu0 0.0
    %1531 = vmatprep.subr.mxu0 0.0
    %1532 = vmatpush1.msra.mxu0 0.0
    %1533 = vmatprep.subr.mxu0 0.0
    %1534 = vmatpush1.msra.mxu0 0.0
    %1535 = vmatprep.mubr.f32.mxu0 0.0
    %1536 = vmatmul.mubr.f32.gmra.mrb[0].mxu0 %v1460
    %v1537 = vpop.f32.mrb[0].mxu0
    %v1538 = vadd.f32 0.0, %v1537
    %v1539 = vpop.f32.mrb[0].mxu0
    %1540 = vmatprep.mubr.f32.mxu0 0.0
    %1541 = vmatmul.mubr.f32.gmra.mrb[0].mxu0 %v1463
    %v1542 = vpop.f32.mrb[0].mxu0
    %v1543 = vadd.f32 0.0, %v1542
    %v1544 = vpop.f32.mrb[0].mxu0
    %1545 = vmatprep.mubr.f32.mxu0 0.0
    %1546 = vmatmul.mubr.f32.gmra.mrb[0].mxu0 %v1466
    %v1547 = vpop.f32.mrb[0].mxu0
    %v1548 = vadd.f32 0.0, %v1547
    %v1549 = vpop.f32.mrb[0].mxu0
    %1550 = vmatprep.mubr.f32.mxu0 0.0
    %1551 = vmatmul.mubr.f32.gmra.mrb[0].mxu0 %v1469
    %v1552 = vpop.f32.mrb[0].mxu0
    %v1553 = vadd.f32 0.0, %v1552
    %v1554 = vpop.f32.mrb[0].mxu0
    %1555 = vdwg.mxu0
    %v1556 = vmul.f32 %v1538, %v1455
    %v1557 = vmul.f32 %v1543, %v1456
    %v1558 = vmul.f32 %v1548, %v1457
    %v1559 = vmul.f32 %v1553, %v1458
    %1560 = vrot.lane.b32.xlu0 %v1283, 96
    %v1561 = vpop.permute.xlu0 %1560
    %1562 = vrot.lane.b32.xlu0 %v1288, 96
    %v1563 = vpop.permute.xlu0 %1562
    %1564 = vrot.lane.b32.xlu0 %v1293, 96
    %v1565 = vpop.permute.xlu0 %1564
    %1566 = vrot.lane.b32.xlu0 %v1298, 96
    %v1567 = vpop.permute.xlu0 %1566
    %v1572 = vadd.f32 %v1556, %v1561
    %v1573 = vadd.f32 %v1557, %v1563
    %v1574 = vadd.f32 %v1558, %v1565
    %v1575 = vadd.f32 %v1559, %v1567
    %1576 = vst.msk [vmem:[#allocation2] sm:$0xff] %vm596, %v1572
    %1577 = vst.msk [vmem:[#allocation2 + $0x8] sm:$0xff] %vm596, %v1573
    %1578 = vst.msk [vmem:[#allocation2 + $0x10] sm:$0xff] %vm596, %v1574
    %1579 = vst.msk [vmem:[#allocation2 + $0x18] sm:$0xff] %vm596, %v1575
    %1580 = vset.pattern.permute.xlu0 65
    %1581 = vperm.xlu0 %1580, %v1283
    %v1582 = vpop.permute.xlu0 %1581
    %1584 = vset.pattern.permute.xlu0 65
    %1585 = vperm.xlu0 %1584, %v1288
    %v1586 = vpop.permute.xlu0 %1585
    %1588 = vset.pattern.permute.xlu0 65
    %1589 = vperm.xlu0 %1588, %v1293
    %v1590 = vpop.permute.xlu0 %1589
    %1592 = vset.pattern.permute.xlu0 65
    %1593 = vperm.xlu0 %1592, %v1298
    %v1594 = vpop.permute.xlu0 %1593
    %v1596 = vlaneseq
    %v1597 = vshrl.u32 %v1596, 7
    %v1598 = vsub.s32 1, %v1597
    %v1599 = vrot.slane %v1372, %v1598
    %v1600 = vadd.f32 %v1582, %v1599
    %v1601 = vadd.f32 %v1586, %v1599
    %v1602 = vadd.f32 %v1590, %v1599
    %v1603 = vadd.f32 %v1594, %v1599
    %v1604 = vadd.f32 %v1600, %v570
    %v1605 = vadd.f32 %v1601, %v571
    %v1606 = vadd.f32 %v1602, %v572
    %v1607 = vadd.f32 %v1603, %v573
    %v1608 = vmul.f32 %v1604, 0.2
    %v1609 = vmul.f32 %v1605, 0.2
    %v1610 = vmul.f32 %v1606, 0.2
    %v1611 = vmul.f32 %v1607, 0.2
    %v1612 = vmax.f32 %v1604, %v1608
    %v1613 = vmax.f32 %v1605, %v1609
    %v1614 = vmax.f32 %v1606, %v1610
    %v1615 = vmax.f32 %v1607, %v1611
    %v1616 = vadd.f32 %v1612, %v91
    %v1617 = vadd.f32 %v1613, %v92
    %v1618 = vadd.f32 %v1614, %v93
    %v1619 = vadd.f32 %v1615, %v94
    %v1620 = vsel %vm812, %v1616, -inf
    %1621 = vmax.xlane.f32.xlu0 %v1620
    %v1622 = vpop.xlane.xlu0 %1621
    %v1623 = vsel %vm812, %v1617, -inf
    %1624 = vmax.xlane.f32.xlu0 %v1623
    %v1625 = vpop.xlane.xlu0 %1624
    %v1626 = vsel %vm812, %v1618, -inf
    %1627 = vmax.xlane.f32.xlu0 %v1626
    %v1628 = vpop.xlane.xlu0 %1627
    %v1629 = vsel %vm812, %v1619, -inf
    %1630 = vmax.xlane.f32.xlu0 %v1629
    %v1631 = vpop.xlane.xlu0 %1630
    %v1632 = vsub.f32 %v1616, %v1622
    %v1633 = vsub.f32 %v1617, %v1625
    %v1634 = vsub.f32 %v1618, %v1628
    %v1635 = vsub.f32 %v1619, %v1631
    %v1636 = vmul.f32 %v1632, 1.442695
    %v1637 = vpow.pop %v1636
    %v1638 = vmul.f32 %v1633, 1.442695
    %v1639 = vpow.pop %v1638
    %v1640 = vmul.f32 %v1634, 1.442695
    %v1641 = vpow.pop %v1640
    %v1642 = vmul.f32 %v1635, 1.442695
    %v1643 = vpow.pop %v1642
    %v1644 = vsel %vm812, %v1637, 0.0
    %1645 = vadd.xlane.f32.xlu0 %v1644
    %v1646 = vpop.xlane.xlu0 %1645
    %v1647 = vsel %vm812, %v1639, 0.0
    %1648 = vadd.xlane.f32.xlu0 %v1647
    %v1649 = vpop.xlane.xlu0 %1648
    %v1650 = vsel %vm812, %v1641, 0.0
    %1651 = vadd.xlane.f32.xlu0 %v1650
    %v1652 = vpop.xlane.xlu0 %1651
    %v1653 = vsel %vm812, %v1643, 0.0
    %1654 = vadd.xlane.f32.xlu0 %v1653
    %v1655 = vpop.xlane.xlu0 %1654
    %v1656 = vrcp.pop %v1646
    %v1657 = vrcp.pop %v1649
    %v1658 = vrcp.pop %v1652
    %v1659 = vrcp.pop %v1655
    %1660 = vrot.lane.b32.xlu0 %v1283, 112
    %v1661 = vpop.permute.xlu0 %1660
    %1662 = vrot.lane.b32.xlu0 %v1288, 112
    %v1663 = vpop.permute.xlu0 %1662
    %1664 = vrot.lane.b32.xlu0 %v1293, 112
    %v1665 = vpop.permute.xlu0 %1664
    %1666 = vrot.lane.b32.xlu0 %v1298, 112
    %v1667 = vpop.permute.xlu0 %1666
    %v1673 = vsel %vm812, %v1637, 0
    %v1676 = vsel %vm812, %v1639, 0
    %v1679 = vsel %vm812, %v1641, 0
    %v1682 = vsel %vm812, %v1643, 0
    %1684 = vmatprep.subr.mxu0 0.0
    %1685 = vmatpush1.msra.mxu0 %v1661
    %1686 = vmatprep.subr.mxu0 0.0
    %1687 = vmatpush1.msra.mxu0 %v1663
    %1688 = vmatprep.subr.mxu0 0.0
    %1689 = vmatpush1.msra.mxu0 %v1665
    %1690 = vmatprep.subr.mxu0 0.0
    %1691 = vmatpush1.msra.mxu0 %v1667
    %1692 = vmatprep.subr.mxu0 0.0
    %1693 = vmatpush1.msra.mxu0 0.0
    %1694 = vmatprep.subr.mxu0 0.0
    %1695 = vmatpush1.msra.mxu0 0.0
    %1696 = vmatprep.subr.mxu0 0.0
    %1697 = vmatpush1.msra.mxu0 0.0
    %1698 = vmatprep.subr.mxu0 0.0
    %1699 = vmatpush1.msra.mxu0 0.0
    %1700 = vmatprep.subr.mxu0 0.0
    %1701 = vmatpush1.msra.mxu0 0.0
    %1702 = vmatprep.subr.mxu0 0.0
    %1703 = vmatpush1.msra.mxu0 0.0
    %1704 = vmatprep.subr.mxu0 0.0
    %1705 = vmatpush1.msra.mxu0 0.0
    %1706 = vmatprep.subr.mxu0 0.0
    %1707 = vmatpush1.msra.mxu0 0.0
    %1708 = vmatprep.subr.mxu0 0.0
    %1709 = vmatpush1.msra.mxu0 0.0
    %1710 = vmatprep.subr.mxu0 0.0
    %1711 = vmatpush1.msra.mxu0 0.0
    %1712 = vmatprep.subr.mxu0 0.0
    %1713 = vmatpush1.msra.mxu0 0.0
    %1714 = vmatprep.subr.mxu0 0.0
    %1715 = vmatpush1.msra.mxu0 0.0
    %1716 = vmatprep.subr.mxu0 0.0
    %1717 = vmatpush1.msra.mxu0 0.0
    %1718 = vmatprep.subr.mxu0 0.0
    %1719 = vmatpush1.msra.mxu0 0.0
    %1720 = vmatprep.subr.mxu0 0.0
    %1721 = vmatpush1.msra.mxu0 0.0
    %1722 = vmatprep.subr.mxu0 0.0
    %1723 = vmatpush1.msra.mxu0 0.0
    %1724 = vmatprep.subr.mxu0 0.0
    %1725 = vmatpush1.msra.mxu0 0.0
    %1726 = vmatprep.subr.mxu0 0.0
    %1727 = vmatpush1.msra.mxu0 0.0
    %1728 = vmatprep.subr.mxu0 0.0
    %1729 = vmatpush1.msra.mxu0 0.0
    %1730 = vmatprep.subr.mxu0 0.0
    %1731 = vmatpush1.msra.mxu0 0.0
    %1732 = vmatprep.subr.mxu0 0.0
    %1733 = vmatpush1.msra.mxu0 0.0
    %1734 = vmatprep.subr.mxu0 0.0
    %1735 = vmatpush1.msra.mxu0 0.0
    %1736 = vmatprep.subr.mxu0 0.0
    %1737 = vmatpush1.msra.mxu0 0.0
    %1738 = vmatprep.subr.mxu0 0.0
    %1739 = vmatpush1.msra.mxu0 0.0
    %1740 = vmatprep.subr.mxu0 0.0
    %1741 = vmatpush1.msra.mxu0 0.0
    %1742 = vmatprep.subr.mxu0 0.0
    %1743 = vmatpush1.msra.mxu0 0.0
    %1744 = vmatprep.subr.mxu0 0.0
    %1745 = vmatpush1.msra.mxu0 0.0
    %1746 = vmatprep.subr.mxu0 0.0
    %1747 = vmatpush1.msra.mxu0 0.0
    %1748 = vmatprep.mubr.f32.mxu0 0.0
    %1749 = vmatmul.mubr.f32.gmra.mrb[0].mxu0 %v1673
    %v1750 = vpop.f32.mrb[0].mxu0
    %v1751 = vadd.f32 0.0, %v1750
    %v1752 = vpop.f32.mrb[0].mxu0
    %1753 = vmatprep.mubr.f32.mxu0 0.0
    %1754 = vmatmul.mubr.f32.gmra.mrb[0].mxu0 %v1676
    %v1755 = vpop.f32.mrb[0].mxu0
    %v1756 = vadd.f32 0.0, %v1755
    %v1757 = vpop.f32.mrb[0].mxu0
    %1758 = vmatprep.mubr.f32.mxu0 0.0
    %1759 = vmatmul.mubr.f32.gmra.mrb[0].mxu0 %v1679
    %v1760 = vpop.f32.mrb[0].mxu0
    %v1761 = vadd.f32 0.0, %v1760
    %v1762 = vpop.f32.mrb[0].mxu0
    %1763 = vmatprep.mubr.f32.mxu0 0.0
    %1764 = vmatmul.mubr.f32.gmra.mrb[0].mxu0 %v1682
    %v1765 = vpop.f32.mrb[0].mxu0
    %v1766 = vadd.f32 0.0, %v1765
    %v1767 = vpop.f32.mrb[0].mxu0
    %1768 = vdwg.mxu0
    %v1769 = vmul.f32 %v1751, %v1656
    %v1770 = vmul.f32 %v1756, %v1657
    %v1771 = vmul.f32 %v1761, %v1658
    %v1772 = vmul.f32 %v1766, %v1659
    %1773 = vrot.lane.b32.xlu0 %v1283, 80
    %v1774 = vpop.permute.xlu0 %1773
    %1775 = vrot.lane.b32.xlu0 %v1288, 80
    %v1776 = vpop.permute.xlu0 %1775
    %1777 = vrot.lane.b32.xlu0 %v1293, 80
    %v1778 = vpop.permute.xlu0 %1777
    %1779 = vrot.lane.b32.xlu0 %v1298, 80
    %v1780 = vpop.permute.xlu0 %1779
    %v1785 = vadd.f32 %v1769, %v1774
    %v1786 = vadd.f32 %v1770, %v1776
    %v1787 = vadd.f32 %v1771, %v1778
    %v1788 = vadd.f32 %v1772, %v1780
    %1793 = vrot.lane.b32.xlu0 %v1785, 16
    %v1794 = vpop.permute.xlu0 %1793
    %1795 = vrot.lane.b32.xlu0 %v1786, 16
    %v1796 = vpop.permute.xlu0 %1795
    %1797 = vrot.lane.b32.xlu0 %v1787, 16
    %v1798 = vpop.permute.xlu0 %1797
    %1799 = vrot.lane.b32.xlu0 %v1788, 16
    %v1800 = vpop.permute.xlu0 %1799
    %1805 = vst.msk [vmem:[#allocation2] sm:$0xff] %vm1167, %v1794
    %1806 = vst.msk [vmem:[#allocation2 + $0x8] sm:$0xff] %vm1167, %v1796
    %1807 = vst.msk [vmem:[#allocation2 + $0x10] sm:$0xff] %vm1167, %v1798
    %1808 = vst.msk [vmem:[#allocation2 + $0x18] sm:$0xff] %vm1167, %v1800
    %v1809 = vld [vmem:[#allocation2] sm:$0xff]
    %v1810 = vld [vmem:[#allocation2 + $0x8] sm:$0xff]
    %v1811 = vld [vmem:[#allocation2 + $0x10] sm:$0xff]
    %v1812 = vld [vmem:[#allocation2 + $0x18] sm:$0xff]
    %vm1813 = vcmp.gt.f32.partialorder %v1809, 0.0
    %vm1814 = vcmp.gt.f32.partialorder %v1810, 0.0
    %vm1815 = vcmp.gt.f32.partialorder %v1811, 0.0
    %vm1816 = vcmp.gt.f32.partialorder %v1812, 0.0
    %v1817 = vmin.f32 %v1809, 0.0
    %v1818 = vmin.f32 %v1810, 0.0
    %v1819 = vmin.f32 %v1811, 0.0
    %v1820 = vmin.f32 %v1812, 0.0
    %v1821 = vmul.f32 %v1817, 1.442695
    %v1822 = vpow.pop %v1821
    %v1823 = vmul.f32 %v1818, 1.442695
    %v1824 = vpow.pop %v1823
    %v1825 = vmul.f32 %v1819, 1.442695
    %v1826 = vpow.pop %v1825
    %v1827 = vmul.f32 %v1820, 1.442695
    %v1828 = vpow.pop %v1827
    %v1829 = vsub.f32 %v1822, 1.0
    %v1830 = vsub.f32 %v1824, 1.0
    %v1831 = vsub.f32 %v1826, 1.0
    %v1832 = vsub.f32 %v1828, 1.0
    %v1833 = vsel %vm1813, %v1809, %v1829
    %v1834 = vsel %vm1814, %v1810, %v1830
    %v1835 = vsel %vm1815, %v1811, %v1831
    %v1836 = vsel %vm1816, %v1812, %v1832
    %v1837 = vld [vmem:[%s9] sm:$0xff]
    %v1838 = vld [vmem:[%s9 + $0x8] sm:$0xff]
    %v1839 = vld [vmem:[%s9 + $0x10] sm:$0xff]
    %v1840 = vld [vmem:[%s9 + $0x18] sm:$0xff]
    %v1842 = vsel %vm812, %v1833, 0
    %v1845 = vsel %vm812, %v1834, 0
    %v1848 = vsel %vm812, %v1835, 0
    %v1851 = vsel %vm812, %v1836, 0
    %1853 = vmatprep.subr.mxu0 0.0
    %1854 = vmatpush1.msra.mxu0 %v1837
    %1855 = vmatprep.subr.mxu0 0.0
    %1856 = vmatpush1.msra.mxu0 %v1838
    %1857 = vmatprep.subr.mxu0 0.0
    %1858 = vmatpush1.msra.mxu0 %v1839
    %1859 = vmatprep.subr.mxu0 0.0
    %1860 = vmatpush1.msra.mxu0 %v1840
    %1861 = vmatprep.subr.mxu0 0.0
    %1862 = vmatpush1.msra.mxu0 0.0
    %1863 = vmatprep.subr.mxu0 0.0
    %1864 = vmatpush1.msra.mxu0 0.0
    %1865 = vmatprep.subr.mxu0 0.0
    %1866 = vmatpush1.msra.mxu0 0.0
    %1867 = vmatprep.subr.mxu0 0.0
    %1868 = vmatpush1.msra.mxu0 0.0
    %1869 = vmatprep.subr.mxu0 0.0
    %1870 = vmatpush1.msra.mxu0 0.0
    %1871 = vmatprep.subr.mxu0 0.0
    %1872 = vmatpush1.msra.mxu0 0.0
    %1873 = vmatprep.subr.mxu0 0.0
    %1874 = vmatpush1.msra.mxu0 0.0
    %1875 = vmatprep.subr.mxu0 0.0
    %1876 = vmatpush1.msra.mxu0 0.0
    %1877 = vmatprep.subr.mxu0 0.0
    %1878 = vmatpush1.msra.mxu0 0.0
    %1879 = vmatprep.subr.mxu0 0.0
    %1880 = vmatpush1.msra.mxu0 0.0
    %1881 = vmatprep.subr.mxu0 0.0
    %1882 = vmatpush1.msra.mxu0 0.0
    %1883 = vmatprep.subr.mxu0 0.0
    %1884 = vmatpush1.msra.mxu0 0.0
    %1885 = vmatprep.subr.mxu0 0.0
    %1886 = vmatpush1.msra.mxu0 0.0
    %1887 = vmatprep.subr.mxu0 0.0
    %1888 = vmatpush1.msra.mxu0 0.0
    %1889 = vmatprep.subr.mxu0 0.0
    %1890 = vmatpush1.msra.mxu0 0.0
    %1891 = vmatprep.subr.mxu0 0.0
    %1892 = vmatpush1.msra.mxu0 0.0
    %1893 = vmatprep.subr.mxu0 0.0
    %1894 = vmatpush1.msra.mxu0 0.0
    %1895 = vmatprep.subr.mxu0 0.0
    %1896 = vmatpush1.msra.mxu0 0.0
    %1897 = vmatprep.subr.mxu0 0.0
    %1898 = vmatpush1.msra.mxu0 0.0
    %1899 = vmatprep.subr.mxu0 0.0
    %1900 = vmatpush1.msra.mxu0 0.0
    %1901 = vmatprep.subr.mxu0 0.0
    %1902 = vmatpush1.msra.mxu0 0.0
    %1903 = vmatprep.subr.mxu0 0.0
    %1904 = vmatpush1.msra.mxu0 0.0
    %1905 = vmatprep.subr.mxu0 0.0
    %1906 = vmatpush1.msra.mxu0 0.0
    %1907 = vmatprep.subr.mxu0 0.0
    %1908 = vmatpush1.msra.mxu0 0.0
    %1909 = vmatprep.subr.mxu0 0.0
    %1910 = vmatpush1.msra.mxu0 0.0
    %1911 = vmatprep.subr.mxu0 0.0
    %1912 = vmatpush1.msra.mxu0 0.0
    %1913 = vmatprep.subr.mxu0 0.0
    %1914 = vmatpush1.msra.mxu0 0.0
    %1915 = vmatprep.subr.mxu0 0.0
    %1916 = vmatpush1.msra.mxu0 0.0
    %1917 = vmatprep.mubr.f32.mxu0 0.0
    %1918 = vmatmul.mubr.f32.gmra.mrb[0].mxu0 %v1842
    %v1919 = vpop.f32.mrb[0].mxu0
    %v1920 = vadd.f32 0.0, %v1919
    %v1921 = vpop.f32.mrb[0].mxu0
    %1922 = vmatprep.mubr.f32.mxu0 0.0
    %1923 = vmatmul.mubr.f32.gmra.mrb[0].mxu0 %v1845
    %v1924 = vpop.f32.mrb[0].mxu0
    %v1925 = vadd.f32 0.0, %v1924
    %v1926 = vpop.f32.mrb[0].mxu0
    %1927 = vmatprep.mubr.f32.mxu0 0.0
    %1928 = vmatmul.mubr.f32.gmra.mrb[0].mxu0 %v1848
    %v1929 = vpop.f32.mrb[0].mxu0
    %v1930 = vadd.f32 0.0, %v1929
    %v1931 = vpop.f32.mrb[0].mxu0
    %1932 = vmatprep.mubr.f32.mxu0 0.0
    %1933 = vmatmul.mubr.f32.gmra.mrb[0].mxu0 %v1851
    %v1934 = vpop.f32.mrb[0].mxu0
    %v1935 = vadd.f32 0.0, %v1934
    %v1936 = vpop.f32.mrb[0].mxu0
    %1937 = vdwg.mxu0
    %v1938 = vld [vmem:[%s10] sm:$0x3]
    %v1940 = vsel %vm812, %v1938, 0
    %1942 = vmatprep.subr.mxu0 0.0
    %1943 = vmatpush1.xpose.msra.mxu0 %v1842
    %1944 = vmatprep.subr.mxu0 0.0
    %1945 = vmatpush1.xpose.msra.mxu0 %v1845
    %1946 = vmatprep.subr.mxu0 0.0
    %1947 = vmatpush1.xpose.msra.mxu0 %v1848
    %1948 = vmatprep.subr.mxu0 0.0
    %1949 = vmatpush1.xpose.msra.mxu0 %v1851
    %1950 = vmatprep.subr.mxu0 0.0
    %1951 = vmatpush1.xpose.msra.mxu0 0.0
    %1952 = vmatprep.subr.mxu0 0.0
    %1953 = vmatpush1.xpose.msra.mxu0 0.0
    %1954 = vmatprep.subr.mxu0 0.0
    %1955 = vmatpush1.xpose.msra.mxu0 0.0
    %1956 = vmatprep.subr.mxu0 0.0
    %1957 = vmatpush1.xpose.msra.mxu0 0.0
    %1958 = vmatprep.subr.mxu0 0.0
    %1959 = vmatpush1.xpose.msra.mxu0 0.0
    %1960 = vmatprep.subr.mxu0 0.0
    %1961 = vmatpush1.xpose.msra.mxu0 0.0
    %1962 = vmatprep.subr.mxu0 0.0
    %1963 = vmatpush1.xpose.msra.mxu0 0.0
    %1964 = vmatprep.subr.mxu0 0.0
    %1965 = vmatpush1.xpose.msra.mxu0 0.0
    %1966 = vmatprep.subr.mxu0 0.0
    %1967 = vmatpush1.xpose.msra.mxu0 0.0
    %1968 = vmatprep.subr.mxu0 0.0
    %1969 = vmatpush1.xpose.msra.mxu0 0.0
    %1970 = vmatprep.subr.mxu0 0.0
    %1971 = vmatpush1.xpose.msra.mxu0 0.0
    %1972 = vmatprep.subr.mxu0 0.0
    %1973 = vmatpush1.xpose.msra.mxu0 0.0
    %1974 = vmatprep.subr.mxu0 0.0
    %1975 = vmatpush1.xpose.msra.mxu0 0.0
    %1976 = vmatprep.subr.mxu0 0.0
    %1977 = vmatpush1.xpose.msra.mxu0 0.0
    %1978 = vmatprep.subr.mxu0 0.0
    %1979 = vmatpush1.xpose.msra.mxu0 0.0
    %1980 = vmatprep.subr.mxu0 0.0
    %1981 = vmatpush1.xpose.msra.mxu0 0.0
    %1982 = vmatprep.subr.mxu0 0.0
    %1983 = vmatpush1.xpose.msra.mxu0 0.0
    %1984 = vmatprep.subr.mxu0 0.0
    %1985 = vmatpush1.xpose.msra.mxu0 0.0
    %1986 = vmatprep.subr.mxu0 0.0
    %1987 = vmatpush1.xpose.msra.mxu0 0.0
    %1988 = vmatprep.subr.mxu0 0.0
    %1989 = vmatpush1.xpose.msra.mxu0 0.0
    %1990 = vmatprep.subr.mxu0 0.0
    %1991 = vmatpush1.xpose.msra.mxu0 0.0
    %1992 = vmatprep.subr.mxu0 0.0
    %1993 = vmatpush1.xpose.msra.mxu0 0.0
    %1994 = vmatprep.subr.mxu0 0.0
    %1995 = vmatpush1.xpose.msra.mxu0 0.0
    %1996 = vmatprep.subr.mxu0 0.0
    %1997 = vmatpush1.xpose.msra.mxu0 0.0
    %1998 = vmatprep.subr.mxu0 0.0
    %1999 = vmatpush1.xpose.msra.mxu0 0.0
    %2000 = vmatprep.subr.mxu0 0.0
    %2001 = vmatpush1.xpose.msra.mxu0 0.0
    %2002 = vmatprep.subr.mxu0 0.0
    %2003 = vmatpush1.xpose.msra.mxu0 0.0
    %2004 = vmatprep.subr.mxu0 0.0
    %2005 = vmatpush1.xpose.msra.mxu0 0.0
    %2006 = vmatprep.mubr.f32.mxu0 0.0
    %2007 = vmatmul.mubr.f32.gmra.mrb[0].mxu0 %v1940
    %v2008 = vpop.f32.mrb[0].mxu0
    %v2009 = vadd.f32 0.0, %v2008
    %v2010 = vpop.f32.mrb[0].mxu0
    %2011 = vdwg.mxu0
    %2013 = vset.pattern.permute.xlu0 16
    %2014 = vperm.xlu0 %2013, %v1920
    %v2015 = vpop.permute.xlu0 %2014
    %2018 = vset.pattern.permute.xlu0 16
    %2019 = vperm.xlu0 %2018, %v1925
    %v2020 = vpop.permute.xlu0 %2019
    %2023 = vset.pattern.permute.xlu0 16
    %2024 = vperm.xlu0 %2023, %v1930
    %v2025 = vpop.permute.xlu0 %2024
    %2028 = vset.pattern.permute.xlu0 16
    %2029 = vperm.xlu0 %2028, %v1935
    %v2030 = vpop.permute.xlu0 %2029
    %v2032 = vlaneseq
    %v2033 = vshrl.u32 %v2032, 7
    %v2034 = vsub.s32 0, %v2033
    %v2035 = vrot.slane %v2009, %v2034
    %v2036 = vadd.f32 %v2015, %v2035
    %v2037 = vadd.f32 %v2020, %v2035
    %v2038 = vadd.f32 %v2025, %v2035
    %v2039 = vadd.f32 %v2030, %v2035
    %v2040 = vadd.f32 %v2036, %v580
    %v2041 = vadd.f32 %v2037, %v581
    %v2042 = vadd.f32 %v2038, %v582
    %v2043 = vadd.f32 %v2039, %v583
    %v2044 = vmul.f32 %v2040, 0.2
    %v2045 = vmul.f32 %v2041, 0.2
    %v2046 = vmul.f32 %v2042, 0.2
    %v2047 = vmul.f32 %v2043, 0.2
    %v2048 = vmax.f32 %v2040, %v2044
    %v2049 = vmax.f32 %v2041, %v2045
    %v2050 = vmax.f32 %v2042, %v2046
    %v2051 = vmax.f32 %v2043, %v2047
    %v2052 = vadd.f32 %v2048, %v91
    %v2053 = vadd.f32 %v2049, %v92
    %v2054 = vadd.f32 %v2050, %v93
    %v2055 = vadd.f32 %v2051, %v94
    %v2056 = vsel %vm812, %v2052, -inf
    %2057 = vmax.xlane.f32.xlu0 %v2056
    %v2058 = vpop.xlane.xlu0 %2057
    %v2059 = vsel %vm812, %v2053, -inf
    %2060 = vmax.xlane.f32.xlu0 %v2059
    %v2061 = vpop.xlane.xlu0 %2060
    %v2062 = vsel %vm812, %v2054, -inf
    %2063 = vmax.xlane.f32.xlu0 %v2062
    %v2064 = vpop.xlane.xlu0 %2063
    %v2065 = vsel %vm812, %v2055, -inf
    %2066 = vmax.xlane.f32.xlu0 %v2065
    %v2067 = vpop.xlane.xlu0 %2066
    %v2068 = vsub.f32 %v2052, %v2058
    %v2069 = vsub.f32 %v2053, %v2061
    %v2070 = vsub.f32 %v2054, %v2064
    %v2071 = vsub.f32 %v2055, %v2067
    %v2072 = vmul.f32 %v2068, 1.442695
    %v2073 = vpow.pop %v2072
    %v2074 = vmul.f32 %v2069, 1.442695
    %v2075 = vpow.pop %v2074
    %v2076 = vmul.f32 %v2070, 1.442695
    %v2077 = vpow.pop %v2076
    %v2078 = vmul.f32 %v2071, 1.442695
    %v2079 = vpow.pop %v2078
    %v2080 = vsel %vm812, %v2073, 0.0
    %2081 = vadd.xlane.f32.xlu0 %v2080
    %v2082 = vpop.xlane.xlu0 %2081
    %v2083 = vsel %vm812, %v2075, 0.0
    %2084 = vadd.xlane.f32.xlu0 %v2083
    %v2085 = vpop.xlane.xlu0 %2084
    %v2086 = vsel %vm812, %v2077, 0.0
    %2087 = vadd.xlane.f32.xlu0 %v2086
    %v2088 = vpop.xlane.xlu0 %2087
    %v2089 = vsel %vm812, %v2079, 0.0
    %2090 = vadd.xlane.f32.xlu0 %v2089
    %v2091 = vpop.xlane.xlu0 %2090
    %v2092 = vrcp.pop %v2082
    %v2093 = vrcp.pop %v2085
    %v2094 = vrcp.pop %v2088
    %v2095 = vrcp.pop %v2091
    %v2097 = vsel %vm812, %v2073, 0
    %v2100 = vsel %vm812, %v2075, 0
    %v2103 = vsel %vm812, %v2077, 0
    %v2106 = vsel %vm812, %v2079, 0
    %2108 = vmatprep.subr.mxu0 0.0
    %2109 = vmatpush1.msra.mxu0 %v1920
    %2110 = vmatprep.subr.mxu0 0.0
    %2111 = vmatpush1.msra.mxu0 %v1925
    %2112 = vmatprep.subr.mxu0 0.0
    %2113 = vmatpush1.msra.mxu0 %v1930
    %2114 = vmatprep.subr.mxu0 0.0
    %2115 = vmatpush1.msra.mxu0 %v1935
    %2116 = vmatprep.subr.mxu0 0.0
    %2117 = vmatpush1.msra.mxu0 0.0
    %2118 = vmatprep.subr.mxu0 0.0
    %2119 = vmatpush1.msra.mxu0 0.0
    %2120 = vmatprep.subr.mxu0 0.0
    %2121 = vmatpush1.msra.mxu0 0.0
    %2122 = vmatprep.subr.mxu0 0.0
    %2123 = vmatpush1.msra.mxu0 0.0
    %2124 = vmatprep.subr.mxu0 0.0
    %2125 = vmatpush1.msra.mxu0 0.0
    %2126 = vmatprep.subr.mxu0 0.0
    %2127 = vmatpush1.msra.mxu0 0.0
    %2128 = vmatprep.subr.mxu0 0.0
    %2129 = vmatpush1.msra.mxu0 0.0
    %2130 = vmatprep.subr.mxu0 0.0
    %2131 = vmatpush1.msra.mxu0 0.0
    %2132 = vmatprep.subr.mxu0 0.0
    %2133 = vmatpush1.msra.mxu0 0.0
    %2134 = vmatprep.subr.mxu0 0.0
    %2135 = vmatpush1.msra.mxu0 0.0
    %2136 = vmatprep.subr.mxu0 0.0
    %2137 = vmatpush1.msra.mxu0 0.0
    %2138 = vmatprep.subr.mxu0 0.0
    %2139 = vmatpush1.msra.mxu0 0.0
    %2140 = vmatprep.subr.mxu0 0.0
    %2141 = vmatpush1.msra.mxu0 0.0
    %2142 = vmatprep.subr.mxu0 0.0
    %2143 = vmatpush1.msra.mxu0 0.0
    %2144 = vmatprep.subr.mxu0 0.0
    %2145 = vmatpush1.msra.mxu0 0.0
    %2146 = vmatprep.subr.mxu0 0.0
    %2147 = vmatpush1.msra.mxu0 0.0
    %2148 = vmatprep.subr.mxu0 0.0
    %2149 = vmatpush1.msra.mxu0 0.0
    %2150 = vmatprep.subr.mxu0 0.0
    %2151 = vmatpush1.msra.mxu0 0.0
    %2152 = vmatprep.subr.mxu0 0.0
    %2153 = vmatpush1.msra.mxu0 0.0
    %2154 = vmatprep.subr.mxu0 0.0
    %2155 = vmatpush1.msra.mxu0 0.0
    %2156 = vmatprep.subr.mxu0 0.0
    %2157 = vmatpush1.msra.mxu0 0.0
    %2158 = vmatprep.subr.mxu0 0.0
    %2159 = vmatpush1.msra.mxu0 0.0
    %2160 = vmatprep.subr.mxu0 0.0
    %2161 = vmatpush1.msra.mxu0 0.0
    %2162 = vmatprep.subr.mxu0 0.0
    %2163 = vmatpush1.msra.mxu0 0.0
    %2164 = vmatprep.subr.mxu0 0.0
    %2165 = vmatpush1.msra.mxu0 0.0
    %2166 = vmatprep.subr.mxu0 0.0
    %2167 = vmatpush1.msra.mxu0 0.0
    %2168 = vmatprep.subr.mxu0 0.0
    %2169 = vmatpush1.msra.mxu0 0.0
    %2170 = vmatprep.subr.mxu0 0.0
    %2171 = vmatpush1.msra.mxu0 0.0
    %2172 = vmatprep.mubr.f32.mxu0 0.0
    %2173 = vmatmul.mubr.f32.gmra.mrb[0].mxu0 %v2097
    %v2174 = vpop.f32.mrb[0].mxu0
    %v2175 = vadd.f32 0.0, %v2174
    %v2176 = vpop.f32.mrb[0].mxu0
    %2177 = vmatprep.mubr.f32.mxu0 0.0
    %2178 = vmatmul.mubr.f32.gmra.mrb[0].mxu0 %v2100
    %v2179 = vpop.f32.mrb[0].mxu0
    %v2180 = vadd.f32 0.0, %v2179
    %v2181 = vpop.f32.mrb[0].mxu0
    %2182 = vmatprep.mubr.f32.mxu0 0.0
    %2183 = vmatmul.mubr.f32.gmra.mrb[0].mxu0 %v2103
    %v2184 = vpop.f32.mrb[0].mxu0
    %v2185 = vadd.f32 0.0, %v2184
    %v2186 = vpop.f32.mrb[0].mxu0
    %2187 = vmatprep.mubr.f32.mxu0 0.0
    %2188 = vmatmul.mubr.f32.gmra.mrb[0].mxu0 %v2106
    %v2189 = vpop.f32.mrb[0].mxu0
    %v2190 = vadd.f32 0.0, %v2189
    %v2191 = vpop.f32.mrb[0].mxu0
    %2192 = vdwg.mxu0
    %v2193 = vmul.f32 %v2175, %v2092
    %v2194 = vmul.f32 %v2180, %v2093
    %v2195 = vmul.f32 %v2185, %v2094
    %v2196 = vmul.f32 %v2190, %v2095
    %2197 = vrot.lane.b32.xlu0 %v1920, 120
    %v2198 = vpop.permute.xlu0 %2197
    %2199 = vrot.lane.b32.xlu0 %v1925, 120
    %v2200 = vpop.permute.xlu0 %2199
    %2201 = vrot.lane.b32.xlu0 %v1930, 120
    %v2202 = vpop.permute.xlu0 %2201
    %2203 = vrot.lane.b32.xlu0 %v1935, 120
    %v2204 = vpop.permute.xlu0 %2203
    %v2209 = vadd.f32 %v2193, %v2198
    %v2210 = vadd.f32 %v2194, %v2200
    %v2211 = vadd.f32 %v2195, %v2202
    %v2212 = vadd.f32 %v2196, %v2204
    %2213 = vset.pattern.permute.xlu0 17
    %2214 = vperm.xlu0 %2213, %v1920
    %v2215 = vpop.permute.xlu0 %2214
    %2217 = vset.pattern.permute.xlu0 17
    %2218 = vperm.xlu0 %2217, %v1925
    %v2219 = vpop.permute.xlu0 %2218
    %2221 = vset.pattern.permute.xlu0 17
    %2222 = vperm.xlu0 %2221, %v1930
    %v2223 = vpop.permute.xlu0 %2222
    %2225 = vset.pattern.permute.xlu0 17
    %2226 = vperm.xlu0 %2225, %v1935
    %v2227 = vpop.permute.xlu0 %2226
    %v2229 = vlaneseq
    %v2230 = vshrl.u32 %v2229, 7
    %v2231 = vsub.s32 1, %v2230
    %v2232 = vrot.slane %v2009, %v2231
    %v2233 = vadd.f32 %v2215, %v2232
    %v2234 = vadd.f32 %v2219, %v2232
    %v2235 = vadd.f32 %v2223, %v2232
    %v2236 = vadd.f32 %v2227, %v2232
    %v2237 = vadd.f32 %v2233, %v590
    %v2238 = vadd.f32 %v2234, %v591
    %v2239 = vadd.f32 %v2235, %v592
    %v2240 = vadd.f32 %v2236, %v593
    %v2241 = vmul.f32 %v2237, 0.2
    %v2242 = vmul.f32 %v2238, 0.2
    %v2243 = vmul.f32 %v2239, 0.2
    %v2244 = vmul.f32 %v2240, 0.2
    %v2245 = vmax.f32 %v2237, %v2241
    %v2246 = vmax.f32 %v2238, %v2242
    %v2247 = vmax.f32 %v2239, %v2243
    %v2248 = vmax.f32 %v2240, %v2244
    %v2249 = vadd.f32 %v2245, %v91
    %v2250 = vadd.f32 %v2246, %v92
    %v2251 = vadd.f32 %v2247, %v93
    %v2252 = vadd.f32 %v2248, %v94
    %v2253 = vsel %vm812, %v2249, -inf
    %2254 = vmax.xlane.f32.xlu0 %v2253
    %v2255 = vpop.xlane.xlu0 %2254
    %v2256 = vsel %vm812, %v2250, -inf
    %2257 = vmax.xlane.f32.xlu0 %v2256
    %v2258 = vpop.xlane.xlu0 %2257
    %v2259 = vsel %vm812, %v2251, -inf
    %2260 = vmax.xlane.f32.xlu0 %v2259
    %v2261 = vpop.xlane.xlu0 %2260
    %v2262 = vsel %vm812, %v2252, -inf
    %2263 = vmax.xlane.f32.xlu0 %v2262
    %v2264 = vpop.xlane.xlu0 %2263
    %v2265 = vsub.f32 %v2249, %v2255
    %v2266 = vsub.f32 %v2250, %v2258
    %v2267 = vsub.f32 %v2251, %v2261
    %v2268 = vsub.f32 %v2252, %v2264
    %v2269 = vmul.f32 %v2265, 1.442695
    %v2270 = vpow.pop %v2269
    %v2271 = vmul.f32 %v2266, 1.442695
    %v2272 = vpow.pop %v2271
    %v2273 = vmul.f32 %v2267, 1.442695
    %v2274 = vpow.pop %v2273
    %v2275 = vmul.f32 %v2268, 1.442695
    %v2276 = vpow.pop %v2275
    %v2277 = vsel %vm812, %v2270, 0.0
    %2278 = vadd.xlane.f32.xlu0 %v2277
    %v2279 = vpop.xlane.xlu0 %2278
    %v2280 = vsel %vm812, %v2272, 0.0
    %2281 = vadd.xlane.f32.xlu0 %v2280
    %v2282 = vpop.xlane.xlu0 %2281
    %v2283 = vsel %vm812, %v2274, 0.0
    %2284 = vadd.xlane.f32.xlu0 %v2283
    %v2285 = vpop.xlane.xlu0 %2284
    %v2286 = vsel %vm812, %v2276, 0.0
    %2287 = vadd.xlane.f32.xlu0 %v2286
    %v2288 = vpop.xlane.xlu0 %2287
    %v2289 = vrcp.pop %v2279
    %v2290 = vrcp.pop %v2282
    %v2291 = vrcp.pop %v2285
    %v2292 = vrcp.pop %v2288
    %2293 = vrot.lane.b32.xlu0 %v1920, 124
    %v2294 = vpop.permute.xlu0 %2293
    %2295 = vrot.lane.b32.xlu0 %v1925, 124
    %v2296 = vpop.permute.xlu0 %2295
    %2297 = vrot.lane.b32.xlu0 %v1930, 124
    %v2298 = vpop.permute.xlu0 %2297
    %2299 = vrot.lane.b32.xlu0 %v1935, 124
    %v2300 = vpop.permute.xlu0 %2299
    %v2306 = vsel %vm812, %v2270, 0
    %v2309 = vsel %vm812, %v2272, 0
    %v2312 = vsel %vm812, %v2274, 0
    %v2315 = vsel %vm812, %v2276, 0
    %2317 = vmatprep.subr.mxu0 0.0
    %2318 = vmatpush1.msra.mxu0 %v2294
    %2319 = vmatprep.subr.mxu0 0.0
    %2320 = vmatpush1.msra.mxu0 %v2296
    %2321 = vmatprep.subr.mxu0 0.0
    %2322 = vmatpush1.msra.mxu0 %v2298
    %2323 = vmatprep.subr.mxu0 0.0
    %2324 = vmatpush1.msra.mxu0 %v2300
    %2325 = vmatprep.subr.mxu0 0.0
    %2326 = vmatpush1.msra.mxu0 0.0
    %2327 = vmatprep.subr.mxu0 0.0
    %2328 = vmatpush1.msra.mxu0 0.0
    %2329 = vmatprep.subr.mxu0 0.0
    %2330 = vmatpush1.msra.mxu0 0.0
    %2331 = vmatprep.subr.mxu0 0.0
    %2332 = vmatpush1.msra.mxu0 0.0
    %2333 = vmatprep.subr.mxu0 0.0
    %2334 = vmatpush1.msra.mxu0 0.0
    %2335 = vmatprep.subr.mxu0 0.0
    %2336 = vmatpush1.msra.mxu0 0.0
    %2337 = vmatprep.subr.mxu0 0.0
    %2338 = vmatpush1.msra.mxu0 0.0
    %2339 = vmatprep.subr.mxu0 0.0
    %2340 = vmatpush1.msra.mxu0 0.0
    %2341 = vmatprep.subr.mxu0 0.0
    %2342 = vmatpush1.msra.mxu0 0.0
    %2343 = vmatprep.subr.mxu0 0.0
    %2344 = vmatpush1.msra.mxu0 0.0
    %2345 = vmatprep.subr.mxu0 0.0
    %2346 = vmatpush1.msra.mxu0 0.0
    %2347 = vmatprep.subr.mxu0 0.0
    %2348 = vmatpush1.msra.mxu0 0.0
    %2349 = vmatprep.subr.mxu0 0.0
    %2350 = vmatpush1.msra.mxu0 0.0
    %2351 = vmatprep.subr.mxu0 0.0
    %2352 = vmatpush1.msra.mxu0 0.0
    %2353 = vmatprep.subr.mxu0 0.0
    %2354 = vmatpush1.msra.mxu0 0.0
    %2355 = vmatprep.subr.mxu0 0.0
    %2356 = vmatpush1.msra.mxu0 0.0
    %2357 = vmatprep.subr.mxu0 0.0
    %2358 = vmatpush1.msra.mxu0 0.0
    %2359 = vmatprep.subr.mxu0 0.0
    %2360 = vmatpush1.msra.mxu0 0.0
    %2361 = vmatprep.subr.mxu0 0.0
    %2362 = vmatpush1.msra.mxu0 0.0
    %2363 = vmatprep.subr.mxu0 0.0
    %2364 = vmatpush1.msra.mxu0 0.0
    %2365 = vmatprep.subr.mxu0 0.0
    %2366 = vmatpush1.msra.mxu0 0.0
    %2367 = vmatprep.subr.mxu0 0.0
    %2368 = vmatpush1.msra.mxu0 0.0
    %2369 = vmatprep.subr.mxu0 0.0
    %2370 = vmatpush1.msra.mxu0 0.0
    %2371 = vmatprep.subr.mxu0 0.0
    %2372 = vmatpush1.msra.mxu0 0.0
    %2373 = vmatprep.subr.mxu0 0.0
    %2374 = vmatpush1.msra.mxu0 0.0
    %2375 = vmatprep.subr.mxu0 0.0
    %2376 = vmatpush1.msra.mxu0 0.0
    %2377 = vmatprep.subr.mxu0 0.0
    %2378 = vmatpush1.msra.mxu0 0.0
    %2379 = vmatprep.subr.mxu0 0.0
    %2380 = vmatpush1.msra.mxu0 0.0
    %2381 = vmatprep.mubr.f32.mxu0 0.0
    %2382 = vmatmul.mubr.f32.gmra.mrb[0].mxu0 %v2306
    %v2383 = vpop.f32.mrb[0].mxu0
    %v2384 = vadd.f32 0.0, %v2383
    %v2385 = vpop.f32.mrb[0].mxu0
    %2386 = vmatprep.mubr.f32.mxu0 0.0
    %2387 = vmatmul.mubr.f32.gmra.mrb[0].mxu0 %v2309
    %v2388 = vpop.f32.mrb[0].mxu0
    %v2389 = vadd.f32 0.0, %v2388
    %v2390 = vpop.f32.mrb[0].mxu0
    %2391 = vmatprep.mubr.f32.mxu0 0.0
    %2392 = vmatmul.mubr.f32.gmra.mrb[0].mxu0 %v2312
    %v2393 = vpop.f32.mrb[0].mxu0
    %v2394 = vadd.f32 0.0, %v2393
    %v2395 = vpop.f32.mrb[0].mxu0
    %2396 = vmatprep.mubr.f32.mxu0 0.0
    %2397 = vmatmul.mubr.f32.gmra.mrb[0].mxu0 %v2315
    %v2398 = vpop.f32.mrb[0].mxu0
    %v2399 = vadd.f32 0.0, %v2398
    %v2400 = vpop.f32.mrb[0].mxu0
    %2401 = vdwg.mxu0
    %v2402 = vmul.f32 %v2384, %v2289
    %v2403 = vmul.f32 %v2389, %v2290
    %v2404 = vmul.f32 %v2394, %v2291
    %v2405 = vmul.f32 %v2399, %v2292
    %2406 = vrot.lane.b32.xlu0 %v1920, 116
    %v2407 = vpop.permute.xlu0 %2406
    %2408 = vrot.lane.b32.xlu0 %v1925, 116
    %v2409 = vpop.permute.xlu0 %2408
    %2410 = vrot.lane.b32.xlu0 %v1930, 116
    %v2411 = vpop.permute.xlu0 %2410
    %2412 = vrot.lane.b32.xlu0 %v1935, 116
    %v2413 = vpop.permute.xlu0 %2412
    %v2418 = vadd.f32 %v2402, %v2407
    %v2419 = vadd.f32 %v2403, %v2409
    %v2420 = vadd.f32 %v2404, %v2411
    %v2421 = vadd.f32 %v2405, %v2413
    %v2422 = vadd.f32 %v2209, %v2418
    %v2423 = vadd.f32 %v2210, %v2419
    %v2424 = vadd.f32 %v2211, %v2420
    %v2425 = vadd.f32 %v2212, %v2421
    %v2426 = vmul.f32 %v2422, 0.5
    %v2427 = vmul.f32 %v2423, 0.5
    %v2428 = vmul.f32 %v2424, 0.5
    %v2429 = vmul.f32 %v2425, 0.5
    %vm2430 = vcmask 31744
    %2431 = vst.msk [vmem:[%s12] sm:$0xff] %vm2430, %v2426
    %2432 = vst.msk [vmem:[%s12 + $0x8] sm:$0xff] %vm2430, %v2427
    %2433 = vst.msk [vmem:[%s12 + $0x10] sm:$0xff] %vm2430, %v2428
    %2434 = vst.msk [vmem:[%s12 + $0x18] sm:$0xff] %vm2430, %v2429
    // Predicated region
    $region66: #{tpu_custom_call.1} parent=1 // pred_check
      _
    $region67: #{tpu_custom_call.1} parent=1 // pred_check_branch
      %2436 = sbr.rel (0) target = $region69
    $region68: #{tpu_custom_call.1} parent=1 // pred_region
      _
    $region69: #{tpu_custom_call.1} parent=1 // pred_fallthru
      _
    // Predicated region
    $region70: #{tpu_custom_call.1} parent=1 // pred_check
      _
    $region71: #{tpu_custom_call.1} parent=1 // pred_check_branch
      %2438 = sbr.rel (0) target = $region73
    $region72: #{tpu_custom_call.1} parent=1 // pred_region
      _
    $region73: #{tpu_custom_call.1} parent=1 // pred_fallthru
      _
    %2439 = vsyncpa [#allocation4], 1
    %2440 = vsyncpa [#allocation5], 1
    %2441 = vsyncpa [#allocation8], 1

</llo_original>
